<compile_context>
chip_gen: v6e
topology: v6e:2x2x1
jax: 0.10.0
libtpu: 0.0.40
codegen_flags: <defaults>
</compile_context>

<pallas_src>
import math
import functools

import numpy as np
import jax
import jax.numpy as jnp
from jax.experimental import pallas as pl
from jax.experimental.pallas import tpu as pltpu


# ----------------------------------------------------------------------------
# Host-side parameter setup: relative-position bucket + bias table.
# Data-independent setup (an embedding gather on a 32-entry table) -> stays in
# plain numpy/JAX; the flattened bias tensor is fed to the kernel.
# ----------------------------------------------------------------------------
def relative_position_bucket(relative_position, num_buckets=32, max_distance=128):
    relative_buckets = np.zeros_like(relative_position)
    num_buckets //= 2
    relative_buckets = relative_buckets + (relative_position > 0).astype(np.int64) * num_buckets
    relative_position = np.abs(relative_position)
    max_exact = num_buckets // 2
    is_small = relative_position < max_exact
    with np.errstate(divide="ignore", invalid="ignore"):
        rp_large_f = np.log(relative_position.astype(np.float32) / max_exact) / math.log(
            max_distance / max_exact
        )
        rp_large = max_exact + (rp_large_f * (num_buckets - max_exact)).astype(np.int64)
    rp_large = np.minimum(rp_large, np.full_like(rp_large, num_buckets - 1))
    relative_buckets = relative_buckets + np.where(is_small, relative_position, rp_large)
    return relative_buckets


def compute_bias(query_length, key_length, emb_table, num_buckets=32, max_distance=128):
    # emb_table: (num_buckets, H)   ->   returns (H, query_length, key_length)
    ctx = np.arange(query_length, dtype=np.int64)[:, None]
    mem = np.arange(key_length, dtype=np.int64)[None, :]
    rel = mem - ctx
    buckets = relative_position_bucket(rel, num_buckets=num_buckets, max_distance=max_distance)
    values = jnp.take(emb_table, jnp.asarray(buckets), axis=0)  # (Nq, Nk, H)
    return jnp.transpose(values, (2, 0, 1))                      # (H, Nq, Nk)


# ----------------------------------------------------------------------------
# Pallas kernel: fused q/k/v projection + multi-head attention + flattened
# position-bias add + output projection for ALL batches in one invocation.
# ----------------------------------------------------------------------------
def cross_attention_kernel(hidden_ref, ctx_ref, wq_ref, wk_ref, wv_ref,
                           wproj_ref, bias_ref, out_ref, *, num_heads):
    B, N, C = hidden_ref.shape
    _, Nc, Dc = ctx_ref.shape
    H = num_heads
    hd = C // H

    # Flatten batch for the projections (leading-dim reshape: no data movement).
    h2 = hidden_ref[...].reshape(B * N, C)        # (B*N, C)
    c2 = ctx_ref[...].reshape(B * Nc, Dc)         # (B*Nc, Dc)

    # Projections (MXU). Scale is pre-folded into wq.
    q = jnp.dot(h2, wq_ref[...], preferred_element_type=jnp.float32).reshape(B, N, C)
    k = jnp.dot(c2, wk_ref[...], preferred_element_type=jnp.float32).reshape(B, Nc, C)
    v = jnp.dot(c2, wv_ref[...], preferred_element_type=jnp.float32).reshape(B, Nc, C)

    # Per-head scaled-dot-product attention, batched over B (f32 softmax).
    head_outs = []
    for hi in range(H):
        lo = hi * hd
        qs = q[:, :, lo:lo + hd]                  # (B, N, hd)
        ks = k[:, :, lo:lo + hd]                  # (B, Nc, hd)
        vs = v[:, :, lo:lo + hd]                  # (B, Nc, hd)

        s = jnp.einsum("bnd,bmd->bnm", qs, ks,
                       preferred_element_type=jnp.float32)        # (B, N, Nc)
        s = s - jnp.max(s, axis=-1, keepdims=True)
        p = jnp.exp(s)
        p = p * pl.reciprocal(jnp.sum(p, axis=-1, keepdims=True), approx=True)

        o = jnp.einsum("bnm,bmd->bnd", p, vs,
                       preferred_element_type=jnp.float32)        # (B, N, hd)
        head_outs.append(o)

    x = jnp.concatenate(head_outs, axis=-1)       # (B, N, C)
    x = x + bias_ref[...][None, :, :]             # flattened (N, C) bias, bcast over B

    out = jnp.dot(x.reshape(B * N, C), wproj_ref[...],
                  preferred_element_type=jnp.float32)             # (B*N, C)
    out_ref[...] = out.reshape(B, N, C)


def cross_attention(hidden, context, wq_t, wkv_t, wproj_t, bias_hnn, num_heads):
    B, N, C = hidden.shape
    _, Nc, Dc = context.shape
    H = num_heads
    hd = C // H
    assert hd * H == C
    assert bias_hnn.shape == (H, N, N)
    # Module quirk: (1, H, N, N) bias is added to the (B, H, N, hd) attention
    # output, so head_dim must equal the query length for the broadcast.
    assert hd == N, "relative position bias broadcast requires head_dim == query_len"

    # Host-side parameter folding (one-time, data-independent):
    scale = 1.0 / math.sqrt(hd)
    wq_scaled = (wq_t * scale).astype(jnp.float32)     # fold 1/sqrt(hd) into wq
    wk_t = wkv_t[:, :C]                                # split fused kv weight
    wv_t = wkv_t[:, C:]
    # (H, N, N) -> (N, H, N) -> (N, H*hd) = (N, C): one lane-dense add in-kernel.
    bias_flat = jnp.transpose(bias_hnn, (1, 0, 2)).reshape(N, C)

    kernel = functools.partial(cross_attention_kernel, num_heads=H)

    # Single invocation: grid=(1,), every block is the full (tiny) array, so
    # weights/activations are DMA'd exactly once.  (On v7x one could instead
    # keep grid=(B,) parallel to use both TensorCores; B=2 here is µs-scale.)
    return pl.pallas_call(
        kernel,
        out_shape=jax.ShapeDtypeStruct((B, N, C), jnp.float32),
        grid_spec=pl.GridSpec(
            grid=(1,),
            in_specs=[
                pl.BlockSpec((B, N, C), lambda i: (0, 0, 0)),
                pl.BlockSpec((B, Nc, Dc), lambda i: (0, 0, 0)),
                pl.BlockSpec((C, C), lambda i: (0, 0)),
                pl.BlockSpec((Dc, C), lambda i: (0, 0)),
                pl.BlockSpec((Dc, C), lambda i: (0, 0)),
                pl.BlockSpec((C, C), lambda i: (0, 0)),
                pl.BlockSpec((N, C), lambda i: (0, 0)),
            ],
            out_specs=pl.BlockSpec((B, N, C), lambda i: (0, 0, 0)),
        ),
        compiler_params=pltpu.CompilerParams(dimension_semantics=("arbitrary",)),
    )(hidden, context, wq_scaled, wk_t, wv_t, wproj_t, bias_flat)


# ----------------------------------------------------------------------------
# Pure-JAX reference (mirrors the PyTorch forward) for a correctness check.
# ----------------------------------------------------------------------------
def reference(hidden, context, wq_t, wkv_t, wproj_t, bias_hnn, num_heads):
    B, N, C = hidden.shape
    _, Nc, _ = context.shape
    hd = C // num_heads
    q = (hidden @ wq_t).reshape(B, N, num_heads, hd).transpose(0, 2, 1, 3)
    kv = (context @ wkv_t).reshape(B, Nc, 2, num_heads, hd).transpose(2, 0, 3, 1, 4)
    k, v = kv[0], kv[1]
    s = jnp.einsum("bhnd,bhmd->bhnm", q, k) * (1.0 / math.sqrt(hd))
    p = jax.nn.softmax(s, axis=-1)
    x = jnp.einsum("bhnm,bhmd->bhnd", p, v)
    x = x + bias_hnn[None]                                   # (1,H,N,N), hd == N
    x = x.transpose(0, 2, 1, 3).reshape(B, N, C)
    return x @ wproj_t


if __name__ == "__main__":
    # Small shapes consistent with the module. head_dim == N so that the
    # position-bias broadcast (as written in the PyTorch code) is valid.
    B = 2
    embed_dim = 32
    num_heads = 4
    head_dim = embed_dim // num_heads        # 8
    N = head_dim                             # 8  (query length == head_dim)
    context_N = 16
    cross_dim = 24
    num_buckets = 32
    max_distance = 128

    key = jax.random.PRNGKey(0)
    k_h, k_c, k_q, k_kv, k_p, k_e = jax.random.split(key, 6)

    hidden = jax.random.normal(k_h, (B, N, embed_dim), dtype=jnp.float32)
    context = jax.random.normal(k_c, (B, context_N, cross_dim), dtype=jnp.float32)

    # Deterministic synthetic parameters, stored as (in_features, out_features).
    wq_t = jax.random.uniform(k_q, (embed_dim, embed_dim), jnp.float32,
                              -1.0 / math.sqrt(embed_dim), 1.0 / math.sqrt(embed_dim))
    wkv_t = jax.random.uniform(k_kv, (cross_dim, 2 * embed_dim), jnp.float32,
                               -1.0 / math.sqrt(cross_dim), 1.0 / math.sqrt(cross_dim))
    wproj_t = jax.random.uniform(k_p, (embed_dim, embed_dim), jnp.float32,
                                 -1.0 / math.sqrt(embed_dim), 1.0 / math.sqrt(embed_dim))
    emb_table = jax.random.normal(k_e, (num_buckets, num_heads), dtype=jnp.float32)

    bias_hnn = compute_bias(N, N, emb_table, num_buckets, max_distance)   # (H, N, N)

    out = cross_attention(hidden, context, wq_t, wkv_t, wproj_t, bias_hnn, num_heads)
    out = jax.block_until_ready(out)

    ref = reference(hidden, context, wq_t, wkv_t, wproj_t, bias_hnn, num_heads)
    # Tolerance 2e-3: pl.reciprocal(approx=True) in the softmax denominator
    # contributes up to ~1e-3 relative error; everything else is f32-exact.
    if not jnp.allclose(out, ref, rtol=2e-3, atol=2e-3):
        raise AssertionError("Pallas kernel output does not match reference")

    print("KERNEL_OK")
</pallas_src>

<mosaic_0001>
module attributes {stable_mosaic.version = 11 : i64} {
  func.func @cross_attention_kernel(%arg0: i32, %arg1: memref<2x8x32xf32, #tpu.memory_space<vmem>>, %arg2: memref<2x16x24xf32, #tpu.memory_space<vmem>>, %arg3: memref<32x32xf32, #tpu.memory_space<vmem>>, %arg4: memref<24x32xf32, #tpu.memory_space<vmem>>, %arg5: memref<24x32xf32, #tpu.memory_space<vmem>>, %arg6: memref<32x32xf32, #tpu.memory_space<vmem>>, %arg7: memref<8x32xf32, #tpu.memory_space<vmem>>, %arg8: memref<2x8x32xf32, #tpu.memory_space<vmem>>) attributes {dimension_semantics = [#tpu.dimension_semantics<arbitrary>], iteration_bounds = array<i64: 1>, scalar_prefetch = 0 : i64, scratch_operands = 0 : i64, tpu.core_type = #tpu.core_type<tc>, window_params = [{pipeline_mode = #tpu.pipeline_mode<synchronous>, transform_indices = @transform_0, window_bounds = array<i64: 2, 8, 32>}, {pipeline_mode = #tpu.pipeline_mode<synchronous>, transform_indices = @transform_1, window_bounds = array<i64: 2, 16, 24>}, {pipeline_mode = #tpu.pipeline_mode<synchronous>, transform_indices = @transform_2, window_bounds = array<i64: 32, 32>}, {pipeline_mode = #tpu.pipeline_mode<synchronous>, transform_indices = @transform_3, window_bounds = array<i64: 24, 32>}, {pipeline_mode = #tpu.pipeline_mode<synchronous>, transform_indices = @transform_4, window_bounds = array<i64: 24, 32>}, {pipeline_mode = #tpu.pipeline_mode<synchronous>, transform_indices = @transform_5, window_bounds = array<i64: 32, 32>}, {pipeline_mode = #tpu.pipeline_mode<synchronous>, transform_indices = @transform_6, window_bounds = array<i64: 8, 32>}, {pipeline_mode = #tpu.pipeline_mode<synchronous>, transform_indices = @transform_7, window_bounds = array<i64: 2, 8, 32>}]} {
    %c0 = arith.constant 0 : index
    %c0_0 = arith.constant 0 : index
    %c0_1 = arith.constant 0 : index
    %0 = vector.load %arg1[%c0, %c0_0, %c0_1] : memref<2x8x32xf32, #tpu.memory_space<vmem>>, vector<2x8x32xf32>
    %1 = vector.shape_cast %0 : vector<2x8x32xf32> to vector<16x32xf32>
    %c0_2 = arith.constant 0 : index
    %c0_3 = arith.constant 0 : index
    %c0_4 = arith.constant 0 : index
    %2 = vector.load %arg2[%c0_2, %c0_3, %c0_4] : memref<2x16x24xf32, #tpu.memory_space<vmem>>, vector<2x16x24xf32>
    %3 = vector.shape_cast %2 : vector<2x16x24xf32> to vector<32x24xf32>
    %c0_5 = arith.constant 0 : index
    %c0_6 = arith.constant 0 : index
    %4 = vector.load %arg3[%c0_5, %c0_6] : memref<32x32xf32, #tpu.memory_space<vmem>>, vector<32x32xf32>
    %cst = arith.constant dense<0.000000e+00> : vector<16x32xf32>
    %5 = tpu.matmul %1, %4, %cst {dimension_numbers = #tpu.dot_dimension_numbers<[1], [0], [0], [1], [0, 0, 1, 1], [], []>} : vector<16x32xf32>, vector<32x32xf32>, vector<16x32xf32> -> vector<16x32xf32>
    %6 = vector.shape_cast %5 : vector<16x32xf32> to vector<2x8x32xf32>
    %c0_7 = arith.constant 0 : index
    %c0_8 = arith.constant 0 : index
    %7 = vector.load %arg4[%c0_7, %c0_8] : memref<24x32xf32, #tpu.memory_space<vmem>>, vector<24x32xf32>
    %cst_9 = arith.constant dense<0.000000e+00> : vector<32x32xf32>
    %8 = tpu.matmul %3, %7, %cst_9 {dimension_numbers = #tpu.dot_dimension_numbers<[1], [0], [0], [1], [0, 0, 1, 1], [], []>} : vector<32x24xf32>, vector<24x32xf32>, vector<32x32xf32> -> vector<32x32xf32>
    %9 = vector.shape_cast %8 : vector<32x32xf32> to vector<2x16x32xf32>
    %c0_10 = arith.constant 0 : index
    %c0_11 = arith.constant 0 : index
    %10 = vector.load %arg5[%c0_10, %c0_11] : memref<24x32xf32, #tpu.memory_space<vmem>>, vector<24x32xf32>
    %cst_12 = arith.constant dense<0.000000e+00> : vector<32x32xf32>
    %11 = tpu.matmul %3, %10, %cst_12 {dimension_numbers = #tpu.dot_dimension_numbers<[1], [0], [0], [1], [0, 0, 1, 1], [], []>} : vector<32x24xf32>, vector<24x32xf32>, vector<32x32xf32> -> vector<32x32xf32>
    %12 = vector.shape_cast %11 : vector<32x32xf32> to vector<2x16x32xf32>
    %13 = vector.extract_strided_slice %6 {offsets = [0, 0, 0], sizes = [2, 8, 8], strides = [1, 1, 1]} : vector<2x8x32xf32> to vector<2x8x8xf32>
    %14 = vector.extract_strided_slice %9 {offsets = [0, 0, 0], sizes = [2, 16, 8], strides = [1, 1, 1]} : vector<2x16x32xf32> to vector<2x16x8xf32>
    %15 = vector.extract_strided_slice %12 {offsets = [0, 0, 0], sizes = [2, 16, 8], strides = [1, 1, 1]} : vector<2x16x32xf32> to vector<2x16x8xf32>
    "tpu.trace_start"() <{level = 10 : i32, message = "bnd,bmd->bnm"}> : () -> ()
    %cst_13 = arith.constant dense<0.000000e+00> : vector<2x8x16xf32>
    %16 = tpu.matmul %13, %14, %cst_13 {dimension_numbers = #tpu.dot_dimension_numbers<[2], [2], [1], [1], [0, 0, 0, 1, 1, 1], [0], [0]>} : vector<2x8x8xf32>, vector<2x16x8xf32>, vector<2x8x16xf32> -> vector<2x8x16xf32>
    "tpu.trace_stop"() : () -> ()
    %cst_14 = arith.constant dense<0xFF800000> : vector<2x8xf32>
    %17 = vector.multi_reduction <maximumf>, %16, %cst_14 [2] : vector<2x8x16xf32> to vector<2x8xf32>
    %18 = vector.shape_cast %17 : vector<2x8xf32> to vector<2x8x1xf32>
    %19 = vector.broadcast %18 : vector<2x8x1xf32> to vector<2x8x16xf32>
    %20 = arith.subf %16, %19 : vector<2x8x16xf32>
    %21 = math.exp %20 : vector<2x8x16xf32>
    %cst_15 = arith.constant dense<0.000000e+00> : vector<2x8xf32>
    %22 = vector.multi_reduction <add>, %21, %cst_15 [2] : vector<2x8x16xf32> to vector<2x8xf32>
    %23 = vector.shape_cast %22 : vector<2x8xf32> to vector<2x8x1xf32>
    %24 = tpu.reciprocal %23 {approx = true} : vector<2x8x1xf32> -> vector<2x8x1xf32>
    %25 = vector.broadcast %24 : vector<2x8x1xf32> to vector<2x8x16xf32>
    %26 = arith.mulf %21, %25 : vector<2x8x16xf32>
    "tpu.trace_start"() <{level = 10 : i32, message = "bnm,bmd->bnd"}> : () -> ()
    %cst_16 = arith.constant dense<0.000000e+00> : vector<2x8x8xf32>
    %27 = tpu.matmul %26, %15, %cst_16 {dimension_numbers = #tpu.dot_dimension_numbers<[2], [1], [1], [2], [0, 0, 0, 1, 1, 2], [0], [0]>} : vector<2x8x16xf32>, vector<2x16x8xf32>, vector<2x8x8xf32> -> vector<2x8x8xf32>
    "tpu.trace_stop"() : () -> ()
    %28 = vector.extract_strided_slice %6 {offsets = [0, 0, 8], sizes = [2, 8, 8], strides = [1, 1, 1]} : vector<2x8x32xf32> to vector<2x8x8xf32>
    %29 = vector.extract_strided_slice %9 {offsets = [0, 0, 8], sizes = [2, 16, 8], strides = [1, 1, 1]} : vector<2x16x32xf32> to vector<2x16x8xf32>
    %30 = vector.extract_strided_slice %12 {offsets = [0, 0, 8], sizes = [2, 16, 8], strides = [1, 1, 1]} : vector<2x16x32xf32> to vector<2x16x8xf32>
    "tpu.trace_start"() <{level = 10 : i32, message = "bnd,bmd->bnm"}> : () -> ()
    %cst_17 = arith.constant dense<0.000000e+00> : vector<2x8x16xf32>
    %31 = tpu.matmul %28, %29, %cst_17 {dimension_numbers = #tpu.dot_dimension_numbers<[2], [2], [1], [1], [0, 0, 0, 1, 1, 1], [0], [0]>} : vector<2x8x8xf32>, vector<2x16x8xf32>, vector<2x8x16xf32> -> vector<2x8x16xf32>
    "tpu.trace_stop"() : () -> ()
    %cst_18 = arith.constant dense<0xFF800000> : vector<2x8xf32>
    %32 = vector.multi_reduction <maximumf>, %31, %cst_18 [2] : vector<2x8x16xf32> to vector<2x8xf32>
    %33 = vector.shape_cast %32 : vector<2x8xf32> to vector<2x8x1xf32>
    %34 = vector.broadcast %33 : vector<2x8x1xf32> to vector<2x8x16xf32>
    %35 = arith.subf %31, %34 : vector<2x8x16xf32>
    %36 = math.exp %35 : vector<2x8x16xf32>
    %cst_19 = arith.constant dense<0.000000e+00> : vector<2x8xf32>
    %37 = vector.multi_reduction <add>, %36, %cst_19 [2] : vector<2x8x16xf32> to vector<2x8xf32>
    %38 = vector.shape_cast %37 : vector<2x8xf32> to vector<2x8x1xf32>
    %39 = tpu.reciprocal %38 {approx = true} : vector<2x8x1xf32> -> vector<2x8x1xf32>
    %40 = vector.broadcast %39 : vector<2x8x1xf32> to vector<2x8x16xf32>
    %41 = arith.mulf %36, %40 : vector<2x8x16xf32>
    "tpu.trace_start"() <{level = 10 : i32, message = "bnm,bmd->bnd"}> : () -> ()
    %cst_20 = arith.constant dense<0.000000e+00> : vector<2x8x8xf32>
    %42 = tpu.matmul %41, %30, %cst_20 {dimension_numbers = #tpu.dot_dimension_numbers<[2], [1], [1], [2], [0, 0, 0, 1, 1, 2], [0], [0]>} : vector<2x8x16xf32>, vector<2x16x8xf32>, vector<2x8x8xf32> -> vector<2x8x8xf32>
    "tpu.trace_stop"() : () -> ()
    %43 = vector.extract_strided_slice %6 {offsets = [0, 0, 16], sizes = [2, 8, 8], strides = [1, 1, 1]} : vector<2x8x32xf32> to vector<2x8x8xf32>
    %44 = vector.extract_strided_slice %9 {offsets = [0, 0, 16], sizes = [2, 16, 8], strides = [1, 1, 1]} : vector<2x16x32xf32> to vector<2x16x8xf32>
    %45 = vector.extract_strided_slice %12 {offsets = [0, 0, 16], sizes = [2, 16, 8], strides = [1, 1, 1]} : vector<2x16x32xf32> to vector<2x16x8xf32>
    "tpu.trace_start"() <{level = 10 : i32, message = "bnd,bmd->bnm"}> : () -> ()
    %cst_21 = arith.constant dense<0.000000e+00> : vector<2x8x16xf32>
    %46 = tpu.matmul %43, %44, %cst_21 {dimension_numbers = #tpu.dot_dimension_numbers<[2], [2], [1], [1], [0, 0, 0, 1, 1, 1], [0], [0]>} : vector<2x8x8xf32>, vector<2x16x8xf32>, vector<2x8x16xf32> -> vector<2x8x16xf32>
    "tpu.trace_stop"() : () -> ()
    %cst_22 = arith.constant dense<0xFF800000> : vector<2x8xf32>
    %47 = vector.multi_reduction <maximumf>, %46, %cst_22 [2] : vector<2x8x16xf32> to vector<2x8xf32>
    %48 = vector.shape_cast %47 : vector<2x8xf32> to vector<2x8x1xf32>
    %49 = vector.broadcast %48 : vector<2x8x1xf32> to vector<2x8x16xf32>
    %50 = arith.subf %46, %49 : vector<2x8x16xf32>
    %51 = math.exp %50 : vector<2x8x16xf32>
    %cst_23 = arith.constant dense<0.000000e+00> : vector<2x8xf32>
    %52 = vector.multi_reduction <add>, %51, %cst_23 [2] : vector<2x8x16xf32> to vector<2x8xf32>
    %53 = vector.shape_cast %52 : vector<2x8xf32> to vector<2x8x1xf32>
    %54 = tpu.reciprocal %53 {approx = true} : vector<2x8x1xf32> -> vector<2x8x1xf32>
    %55 = vector.broadcast %54 : vector<2x8x1xf32> to vector<2x8x16xf32>
    %56 = arith.mulf %51, %55 : vector<2x8x16xf32>
    "tpu.trace_start"() <{level = 10 : i32, message = "bnm,bmd->bnd"}> : () -> ()
    %cst_24 = arith.constant dense<0.000000e+00> : vector<2x8x8xf32>
    %57 = tpu.matmul %56, %45, %cst_24 {dimension_numbers = #tpu.dot_dimension_numbers<[2], [1], [1], [2], [0, 0, 0, 1, 1, 2], [0], [0]>} : vector<2x8x16xf32>, vector<2x16x8xf32>, vector<2x8x8xf32> -> vector<2x8x8xf32>
    "tpu.trace_stop"() : () -> ()
    %58 = vector.extract_strided_slice %6 {offsets = [0, 0, 24], sizes = [2, 8, 8], strides = [1, 1, 1]} : vector<2x8x32xf32> to vector<2x8x8xf32>
    %59 = vector.extract_strided_slice %9 {offsets = [0, 0, 24], sizes = [2, 16, 8], strides = [1, 1, 1]} : vector<2x16x32xf32> to vector<2x16x8xf32>
    %60 = vector.extract_strided_slice %12 {offsets = [0, 0, 24], sizes = [2, 16, 8], strides = [1, 1, 1]} : vector<2x16x32xf32> to vector<2x16x8xf32>
    "tpu.trace_start"() <{level = 10 : i32, message = "bnd,bmd->bnm"}> : () -> ()
    %cst_25 = arith.constant dense<0.000000e+00> : vector<2x8x16xf32>
    %61 = tpu.matmul %58, %59, %cst_25 {dimension_numbers = #tpu.dot_dimension_numbers<[2], [2], [1], [1], [0, 0, 0, 1, 1, 1], [0], [0]>} : vector<2x8x8xf32>, vector<2x16x8xf32>, vector<2x8x16xf32> -> vector<2x8x16xf32>
    "tpu.trace_stop"() : () -> ()
    %cst_26 = arith.constant dense<0xFF800000> : vector<2x8xf32>
    %62 = vector.multi_reduction <maximumf>, %61, %cst_26 [2] : vector<2x8x16xf32> to vector<2x8xf32>
    %63 = vector.shape_cast %62 : vector<2x8xf32> to vector<2x8x1xf32>
    %64 = vector.broadcast %63 : vector<2x8x1xf32> to vector<2x8x16xf32>
    %65 = arith.subf %61, %64 : vector<2x8x16xf32>
    %66 = math.exp %65 : vector<2x8x16xf32>
    %cst_27 = arith.constant dense<0.000000e+00> : vector<2x8xf32>
    %67 = vector.multi_reduction <add>, %66, %cst_27 [2] : vector<2x8x16xf32> to vector<2x8xf32>
    %68 = vector.shape_cast %67 : vector<2x8xf32> to vector<2x8x1xf32>
    %69 = tpu.reciprocal %68 {approx = true} : vector<2x8x1xf32> -> vector<2x8x1xf32>
    %70 = vector.broadcast %69 : vector<2x8x1xf32> to vector<2x8x16xf32>
    %71 = arith.mulf %66, %70 : vector<2x8x16xf32>
    "tpu.trace_start"() <{level = 10 : i32, message = "bnm,bmd->bnd"}> : () -> ()
    %cst_28 = arith.constant dense<0.000000e+00> : vector<2x8x8xf32>
    %72 = tpu.matmul %71, %60, %cst_28 {dimension_numbers = #tpu.dot_dimension_numbers<[2], [1], [1], [2], [0, 0, 0, 1, 1, 2], [0], [0]>} : vector<2x8x16xf32>, vector<2x16x8xf32>, vector<2x8x8xf32> -> vector<2x8x8xf32>
    "tpu.trace_stop"() : () -> ()
    %73 = tpu.concatenate %27, %42, %57, %72 in 2 : vector<2x8x8xf32>, vector<2x8x8xf32>, vector<2x8x8xf32>, vector<2x8x8xf32> -> vector<2x8x32xf32>
    %c0_29 = arith.constant 0 : index
    %c0_30 = arith.constant 0 : index
    %74 = vector.load %arg7[%c0_29, %c0_30] : memref<8x32xf32, #tpu.memory_space<vmem>>, vector<8x32xf32>
    %75 = vector.shape_cast %74 : vector<8x32xf32> to vector<1x8x32xf32>
    %76 = vector.broadcast %75 : vector<1x8x32xf32> to vector<2x8x32xf32>
    %77 = arith.addf %73, %76 : vector<2x8x32xf32>
    %78 = vector.shape_cast %77 : vector<2x8x32xf32> to vector<16x32xf32>
    %c0_31 = arith.constant 0 : index
    %c0_32 = arith.constant 0 : index
    %79 = vector.load %arg6[%c0_31, %c0_32] : memref<32x32xf32, #tpu.memory_space<vmem>>, vector<32x32xf32>
    %cst_33 = arith.constant dense<0.000000e+00> : vector<16x32xf32>
    %80 = tpu.matmul %78, %79, %cst_33 {dimension_numbers = #tpu.dot_dimension_numbers<[1], [0], [0], [1], [0, 0, 1, 1], [], []>} : vector<16x32xf32>, vector<32x32xf32>, vector<16x32xf32> -> vector<16x32xf32>
    %81 = vector.shape_cast %80 : vector<16x32xf32> to vector<2x8x32xf32>
    %c0_34 = arith.constant 0 : index
    %c0_35 = arith.constant 0 : index
    %c0_36 = arith.constant 0 : index
    %82 = vector.load %arg8[%c0_34, %c0_35, %c0_36] : memref<2x8x32xf32, #tpu.memory_space<vmem>>, vector<2x8x32xf32>
    tpu.vector_store %arg8[%c0_34, %c0_35, %c0_36], %81 {strides = array<i32>} : memref<2x8x32xf32, #tpu.memory_space<vmem>>, vector<2x8x32xf32>,
    return
  }
  func.func @transform_0(%arg0: i32) -> (i32, i32, i32) {
    %c0_i32 = arith.constant 0 : i32
    %c0_i32_0 = arith.constant 0 : i32
    %c0_i32_1 = arith.constant 0 : i32
    %c0_i32_2 = arith.constant 0 : i32
    return %c0_i32, %c0_i32_0, %c0_i32_1 : i32, i32, i32
  }
  func.func @transform_1(%arg0: i32) -> (i32, i32, i32) {
    %c0_i32 = arith.constant 0 : i32
    %c0_i32_0 = arith.constant 0 : i32
    %c0_i32_1 = arith.constant 0 : i32
    %c0_i32_2 = arith.constant 0 : i32
    return %c0_i32, %c0_i32_0, %c0_i32_1 : i32, i32, i32
  }
  func.func @transform_2(%arg0: i32) -> (i32, i32) {
    %c0_i32 = arith.constant 0 : i32
    %c0_i32_0 = arith.constant 0 : i32
    %c0_i32_1 = arith.constant 0 : i32
    return %c0_i32, %c0_i32_0 : i32, i32
  }
  func.func @transform_3(%arg0: i32) -> (i32, i32) {
    %c0_i32 = arith.constant 0 : i32
    %c0_i32_0 = arith.constant 0 : i32
    %c0_i32_1 = arith.constant 0 : i32
    return %c0_i32, %c0_i32_0 : i32, i32
  }
  func.func @transform_4(%arg0: i32) -> (i32, i32) {
    %c0_i32 = arith.constant 0 : i32
    %c0_i32_0 = arith.constant 0 : i32
    %c0_i32_1 = arith.constant 0 : i32
    return %c0_i32, %c0_i32_0 : i32, i32
  }
  func.func @transform_5(%arg0: i32) -> (i32, i32) {
    %c0_i32 = arith.constant 0 : i32
    %c0_i32_0 = arith.constant 0 : i32
    %c0_i32_1 = arith.constant 0 : i32
    return %c0_i32, %c0_i32_0 : i32, i32
  }
  func.func @transform_6(%arg0: i32) -> (i32, i32) {
    %c0_i32 = arith.constant 0 : i32
    %c0_i32_0 = arith.constant 0 : i32
    %c0_i32_1 = arith.constant 0 : i32
    return %c0_i32, %c0_i32_0 : i32, i32
  }
  func.func @transform_7(%arg0: i32) -> (i32, i32, i32) {
    %c0_i32 = arith.constant 0 : i32
    %c0_i32_0 = arith.constant 0 : i32
    %c0_i32_1 = arith.constant 0 : i32
    %c0_i32_2 = arith.constant 0 : i32
    return %c0_i32, %c0_i32_0, %c0_i32_1 : i32, i32, i32
  }
}

</mosaic_0001>

<llo_original>
// kernel: tpu_custom_call.1
$region0: #{tpu_custom_call.1}
  #allocation0 [shape = 'u32[]', space=smem, size = 0x4, offset = 0x4, fixed_abs, tag = 'smem constant byte address 0x4 - core index']
  #allocation1 [shape = 'u32[144,128]{1,0:T(1,128)}', space=vmem, size = 0x12000, scoped, tag = 'internal scratch']
  %s0 = inlined_call_operand.hbm [shape: f32[2,8,32], index: 0, kind: input, shape index: {}]
  %s1 = inlined_call_operand.hbm [shape: f32[2,16,24], index: 1, kind: input, shape index: {}]
  %s2 = inlined_call_operand.hbm [shape: f32[32,32], index: 2, kind: input, shape index: {}]
  %s3 = inlined_call_operand.hbm [shape: f32[24,32], index: 3, kind: input, shape index: {}]
  %s4 = inlined_call_operand.hbm [shape: f32[24,32], index: 4, kind: input, shape index: {}]
  %s5 = inlined_call_operand.hbm [shape: f32[32,32], index: 5, kind: input, shape index: {}]
  %s6 = inlined_call_operand.vmem [shape: f32[8,32], index: 6, kind: input, shape index: {}]
  %s7 = inlined_call_operand.hbm [shape: f32[2,8,32], index: 7, kind: output, shape index: {}]
  %s8 = sld [smem:[#allocation0]]
  $region62: #{tpu_custom_call.1} parent=0
    _
  %s10 = ssub.s32 1, %s8
  %s11 = scalar_select 0, %s10, %s8
  $region1: #{tpu_custom_call.1} parent=0
    #allocation2 [shape = 'u8[8192]{0}', space=vmem, size = 0x2000, scoped, tag = 'input window, operand 0, single buffered']
    #allocation3 [shape = 's32[1]{0}', space=sflag, size = 0x4, scoped, tag = 'scoped memory for tpu_custom_call.1']
    #allocation4 [shape = 's32[1]{0}', space=sflag, size = 0x4, scoped, tag = 'scoped memory for tpu_custom_call.1']
    #allocation5 [shape = 'u8[16384]{0}', space=vmem, size = 0x4000, scoped, tag = 'input window, operand 1, single buffered']
    #allocation6 [shape = 's32[1]{0}', space=sflag, size = 0x4, scoped, tag = 'scoped memory for tpu_custom_call.1']
    #allocation7 [shape = 'u8[16384]{0}', space=vmem, size = 0x4000, scoped, tag = 'input window, operand 2, single buffered']
    #allocation8 [shape = 'u8[12288]{0}', space=vmem, size = 0x3000, scoped, tag = 'input window, operand 3, single buffered']
    #allocation9 [shape = 's32[1]{0}', space=sflag, size = 0x4, scoped, tag = 'scoped memory for tpu_custom_call.1']
    #allocation10 [shape = 'u8[12288]{0}', space=vmem, size = 0x3000, scoped, tag = 'input window, operand 4, single buffered']
    #allocation11 [shape = 'u8[16384]{0}', space=vmem, size = 0x4000, scoped, tag = 'input window, operand 5, single buffered']
    #allocation12 [shape = 's32[1]{0}', space=sflag, size = 0x4, scoped, tag = 'scoped memory for tpu_custom_call.1']
    #allocation13 [shape = 'u8[8192]{0}', space=vmem, size = 0x2000, scoped, tag = 'output window, operand 0, single buffered']
    %12 = vsyncpa [#allocation3], 0
    %13 = vsyncpa [#allocation6], 0
    %14 = vsyncpa [#allocation9], 0
    %15 = vsyncpa [#allocation12], 0
    %16 = vsyncpa [#allocation4], 0
    // Predicated region
    $region2: #{tpu_custom_call.1} parent=1 // pred_check
      _
    $region3: #{tpu_custom_call.1} parent=1 // pred_check_branch
      %18 = sbr.rel (0) target = $region5
    $region4: #{tpu_custom_call.1} parent=1 // pred_region
      %s20 = ssub.s32 256, 256
      %21 = vsyncadd [#allocation3], %s20
      %s22 = sshll.u32 [#allocation2], 4
      %s23 = int_to_ptr.vmem [resolvable:$true] %s22
      %28 = dma.hbm_to_vmem [thread:$0]  %s0, 256, %s23, [#allocation3], 128, 128, 8
    $region5: #{tpu_custom_call.1} parent=1 // pred_fallthru
      _
    // Predicated region
    $region6: #{tpu_custom_call.1} parent=1 // pred_check
      _
    $region7: #{tpu_custom_call.1} parent=1 // pred_check_branch
      %30 = sbr.rel (0) target = $region9
    $region8: #{tpu_custom_call.1} parent=1 // pred_region
      %s32 = ssub.s32 512, 512
      %33 = vsyncadd [#allocation6], %s32
      %s34 = sshll.u32 [#allocation5], 4
      %s35 = int_to_ptr.vmem [resolvable:$true] %s34
      %40 = dma.hbm_to_vmem [thread:$0]  %s1, 512, %s35, [#allocation6], 128, 128, 8
    $region9: #{tpu_custom_call.1} parent=1 // pred_fallthru
      _
    // Predicated region
    $region10: #{tpu_custom_call.1} parent=1 // pred_check
      _
    $region11: #{tpu_custom_call.1} parent=1 // pred_check_branch
      %42 = sbr.rel (0) target = $region13
    $region12: #{tpu_custom_call.1} parent=1 // pred_region
      %s44 = ssub.s32 512, 512
      %45 = vsyncadd [#allocation6], %s44
      %s46 = sshll.u32 [#allocation7], 4
      %s47 = int_to_ptr.vmem [resolvable:$true] %s46
      %52 = dma.hbm_to_vmem [thread:$0]  %s2, 512, %s47, [#allocation6], 128, 128, 8
    $region13: #{tpu_custom_call.1} parent=1 // pred_fallthru
      _
    // Predicated region
    $region14: #{tpu_custom_call.1} parent=1 // pred_check
      _
    $region15: #{tpu_custom_call.1} parent=1 // pred_check_branch
      %54 = sbr.rel (0) target = $region17
    $region16: #{tpu_custom_call.1} parent=1 // pred_region
      %s56 = ssub.s32 384, 384
      %57 = vsyncadd [#allocation9], %s56
      %s58 = sshll.u32 [#allocation8], 4
      %s59 = int_to_ptr.vmem [resolvable:$true] %s58
      %64 = dma.hbm_to_vmem [thread:$0]  %s3, 384, %s59, [#allocation9], 128, 128, 8
    $region17: #{tpu_custom_call.1} parent=1 // pred_fallthru
      _
    // Predicated region
    $region18: #{tpu_custom_call.1} parent=1 // pred_check
      _
    $region19: #{tpu_custom_call.1} parent=1 // pred_check_branch
      %66 = sbr.rel (0) target = $region21
    $region20: #{tpu_custom_call.1} parent=1 // pred_region
      %s68 = ssub.s32 384, 384
      %69 = vsyncadd [#allocation9], %s68
      %s70 = sshll.u32 [#allocation10], 4
      %s71 = int_to_ptr.vmem [resolvable:$true] %s70
      %76 = dma.hbm_to_vmem [thread:$0]  %s4, 384, %s71, [#allocation9], 128, 128, 8
    $region21: #{tpu_custom_call.1} parent=1 // pred_fallthru
      _
    // Predicated region
    $region22: #{tpu_custom_call.1} parent=1 // pred_check
      _
    $region23: #{tpu_custom_call.1} parent=1 // pred_check_branch
      %78 = sbr.rel (0) target = $region25
    $region24: #{tpu_custom_call.1} parent=1 // pred_region
      %s80 = ssub.s32 512, 512
      %81 = vsyncadd [#allocation12], %s80
      %s82 = sshll.u32 [#allocation11], 4
      %s83 = int_to_ptr.vmem [resolvable:$true] %s82
      %88 = dma.hbm_to_vmem [thread:$0]  %s5, 512, %s83, [#allocation12], 128, 128, 8
    $region25: #{tpu_custom_call.1} parent=1 // pred_fallthru
      _
    // Predicated region
    $region26: #{tpu_custom_call.1} parent=1 // pred_check
      _
    $region27: #{tpu_custom_call.1} parent=1 // pred_check_branch
      %90 = sbr.rel (0) target = $region29
    $region28: #{tpu_custom_call.1} parent=1 // pred_region
      _
    $region29: #{tpu_custom_call.1} parent=1 // pred_fallthru
      _
    // Predicated region
    $region30: #{tpu_custom_call.1} parent=1 // pred_check
      _
    $region31: #{tpu_custom_call.1} parent=1 // pred_check_branch
      %92 = sbr.rel (0) target = $region33
    $region32: #{tpu_custom_call.1} parent=1 // pred_region
      %93 = dma.done [#allocation3], 256
    $region33: #{tpu_custom_call.1} parent=1 // pred_fallthru
      _
    // Predicated region
    $region34: #{tpu_custom_call.1} parent=1 // pred_check
      _
    $region35: #{tpu_custom_call.1} parent=1 // pred_check_branch
      %95 = sbr.rel (0) target = $region37
    $region36: #{tpu_custom_call.1} parent=1 // pred_region
      %96 = dma.done [#allocation6], 512
    $region37: #{tpu_custom_call.1} parent=1 // pred_fallthru
      _
    // Predicated region
    $region38: #{tpu_custom_call.1} parent=1 // pred_check
      _
    $region39: #{tpu_custom_call.1} parent=1 // pred_check_branch
      %98 = sbr.rel (0) target = $region41
    $region40: #{tpu_custom_call.1} parent=1 // pred_region
      %99 = dma.done [#allocation6], 512
    $region41: #{tpu_custom_call.1} parent=1 // pred_fallthru
      _
    // Predicated region
    $region42: #{tpu_custom_call.1} parent=1 // pred_check
      _
    $region43: #{tpu_custom_call.1} parent=1 // pred_check_branch
      %101 = sbr.rel (0) target = $region45
    $region44: #{tpu_custom_call.1} parent=1 // pred_region
      %102 = dma.done [#allocation9], 384
    $region45: #{tpu_custom_call.1} parent=1 // pred_fallthru
      _
    // Predicated region
    $region46: #{tpu_custom_call.1} parent=1 // pred_check
      _
    $region47: #{tpu_custom_call.1} parent=1 // pred_check_branch
      %104 = sbr.rel (0) target = $region49
    $region48: #{tpu_custom_call.1} parent=1 // pred_region
      %105 = dma.done [#allocation9], 384
    $region49: #{tpu_custom_call.1} parent=1 // pred_fallthru
      _
    // Predicated region
    $region50: #{tpu_custom_call.1} parent=1 // pred_check
      _
    $region51: #{tpu_custom_call.1} parent=1 // pred_check_branch
      %107 = sbr.rel (0) target = $region53
    $region52: #{tpu_custom_call.1} parent=1 // pred_region
      %108 = dma.done [#allocation12], 512
    $region53: #{tpu_custom_call.1} parent=1 // pred_fallthru
      _
    %v109 = vld [vmem:[#allocation2] sm:$0xff]
    %v110 = vld [vmem:[#allocation2 + $0x8] sm:$0xff]
    %v111 = vld [vmem:[#allocation5] sm:$0xff]
    %v112 = vld [vmem:[#allocation5 + $0x8] sm:$0xff]
    %v113 = vld [vmem:[#allocation5 + $0x10] sm:$0xff]
    %v114 = vld [vmem:[#allocation5 + $0x18] sm:$0xff]
    %v115 = vld [vmem:[#allocation7] sm:$0xff]
    %v116 = vld [vmem:[#allocation7 + $0x8] sm:$0xff]
    %v117 = vld [vmem:[#allocation7 + $0x10] sm:$0xff]
    %v118 = vld [vmem:[#allocation7 + $0x18] sm:$0xff]
    %vm119 = vcmask 261120
    %v121 = vsel %vm119, %v109, 0
    %v124 = vsel %vm119, %v110, 0
    %126 = vmatprep.subr.mxu0 0.0
    %127 = vmatpush1.msra.mxu0 0.0
    %128 = vmatprep.subr.mxu0 0.0
    %129 = vmatpush1.msra.mxu0 0.0
    %130 = vmatprep.subr.mxu0 0.0
    %131 = vmatpush1.msra.mxu0 0.0
    %132 = vmatprep.subr.mxu0 0.0
    %133 = vmatpush1.msra.mxu0 0.0
    %134 = vmatprep.subr.mxu0 0.0
    %135 = vmatpush1.msra.mxu0 0.0
    %136 = vmatprep.subr.mxu0 0.0
    %137 = vmatpush1.msra.mxu0 0.0
    %138 = vmatprep.subr.mxu0 0.0
    %139 = vmatpush1.msra.mxu0 0.0
    %140 = vmatprep.subr.mxu0 0.0
    %141 = vmatpush1.msra.mxu0 0.0
    %142 = vmatprep.subr.mxu0 0.0
    %143 = vmatpush1.msra.mxu0 0.0
    %144 = vmatprep.subr.mxu0 0.0
    %145 = vmatpush1.msra.mxu0 0.0
    %146 = vmatprep.subr.mxu0 0.0
    %147 = vmatpush1.msra.mxu0 0.0
    %148 = vmatprep.subr.mxu0 0.0
    %149 = vmatpush1.msra.mxu0 0.0
    %150 = vmatprep.subr.mxu0 0.0
    %151 = vmatpush1.msra.mxu0 %v118
    %152 = vmatprep.subr.mxu0 0.0
    %153 = vmatpush1.msra.mxu0 %v117
    %154 = vmatprep.subr.mxu0 0.0
    %155 = vmatpush1.msra.mxu0 %v116
    %156 = vmatprep.subr.mxu0 0.0
    %157 = vmatpush1.msra.mxu0 %v115
    %158 = vmatprep.subr.mxu0 0.0
    %159 = vmatpush2.msra.mxu0 0.0
    %160 = vmatprep.subr.mxu0 0.0
    %161 = vmatpush2.msra.mxu0 0.0
    %162 = vmatprep.subr.mxu0 0.0
    %163 = vmatpush2.msra.mxu0 0.0
    %164 = vmatprep.subr.mxu0 0.0
    %165 = vmatpush2.msra.mxu0 0.0
    %166 = vmatprep.subr.mxu0 0.0
    %167 = vmatpush2.msra.mxu0 0.0
    %168 = vmatprep.subr.mxu0 0.0
    %169 = vmatpush2.msra.mxu0 0.0
    %170 = vmatprep.subr.mxu0 0.0
    %171 = vmatpush2.msra.mxu0 0.0
    %172 = vmatprep.subr.mxu0 0.0
    %173 = vmatpush2.msra.mxu0 0.0
    %174 = vmatprep.subr.mxu0 0.0
    %175 = vmatpush2.msra.mxu0 0.0
    %176 = vmatprep.subr.mxu0 0.0
    %177 = vmatpush2.msra.mxu0 0.0
    %178 = vmatprep.subr.mxu0 0.0
    %179 = vmatpush2.msra.mxu0 0.0
    %180 = vmatprep.subr.mxu0 0.0
    %181 = vmatpush2.msra.mxu0 0.0
    %182 = vmatprep.subr.mxu0 0.0
    %183 = vmatpush2.msra.mxu0 0.0
    %184 = vmatprep.subr.mxu0 0.0
    %185 = vmatpush2.msra.mxu0 0.0
    %186 = vmatprep.subr.mxu0 0.0
    %187 = vmatpush2.msra.mxu0 0.0
    %188 = vmatprep.subr.mxu0 0.0
    %189 = vmatpush2.msra.mxu0 0.0
    %190 = vmatprep.mubr.f32.mxu0 0.0
    %191 = vmatmul.mubr.f32.gmra.mxu0 %v121
    %v192 = vpop.f32.mrf.mxu0
    %v193 = vadd.f32 0.0, %v192
    %v194 = vpop.f32.mrf.mxu0
    %195 = vmatprep.mubr.f32.mxu0 0.0
    %196 = vmatmul.mubr.f32.gmra.mxu0 %v124
    %v197 = vpop.f32.mrf.mxu0
    %v198 = vadd.f32 0.0, %v197
    %v199 = vpop.f32.mrf.mxu0
    %200 = vdwg.mxu0
    %v201 = vld [vmem:[#allocation8] sm:$0xff]
    %v202 = vld [vmem:[#allocation8 + $0x8] sm:$0xff]
    %v203 = vld [vmem:[#allocation8 + $0x10] sm:$0xff]
    %vm204 = vcmask 195584
    %v206 = vsel %vm204, %v111, 0
    %v209 = vsel %vm204, %v112, 0
    %v212 = vsel %vm204, %v113, 0
    %v215 = vsel %vm204, %v114, 0
    %217 = vmatprep.subr.mxu0 0.0
    %218 = vmatpush1.msra.mxu0 0.0
    %219 = vmatprep.subr.mxu0 0.0
    %220 = vmatpush1.msra.mxu0 0.0
    %221 = vmatprep.subr.mxu0 0.0
    %222 = vmatpush1.msra.mxu0 0.0
    %223 = vmatprep.subr.mxu0 0.0
    %224 = vmatpush1.msra.mxu0 0.0
    %225 = vmatprep.subr.mxu0 0.0
    %226 = vmatpush1.msra.mxu0 0.0
    %227 = vmatprep.subr.mxu0 0.0
    %228 = vmatpush1.msra.mxu0 0.0
    %229 = vmatprep.subr.mxu0 0.0
    %230 = vmatpush1.msra.mxu0 0.0
    %231 = vmatprep.subr.mxu0 0.0
    %232 = vmatpush1.msra.mxu0 0.0
    %233 = vmatprep.subr.mxu0 0.0
    %234 = vmatpush1.msra.mxu0 0.0
    %235 = vmatprep.subr.mxu0 0.0
    %236 = vmatpush1.msra.mxu0 0.0
    %237 = vmatprep.subr.mxu0 0.0
    %238 = vmatpush1.msra.mxu0 0.0
    %239 = vmatprep.subr.mxu0 0.0
    %240 = vmatpush1.msra.mxu0 0.0
    %241 = vmatprep.subr.mxu0 0.0
    %242 = vmatpush1.msra.mxu0 0.0
    %243 = vmatprep.subr.mxu0 0.0
    %244 = vmatpush1.msra.mxu0 %v203
    %245 = vmatprep.subr.mxu0 0.0
    %246 = vmatpush1.msra.mxu0 %v202
    %247 = vmatprep.subr.mxu0 0.0
    %248 = vmatpush1.msra.mxu0 %v201
    %249 = vmatprep.subr.mxu0 0.0
    %250 = vmatpush2.msra.mxu0 0.0
    %251 = vmatprep.subr.mxu0 0.0
    %252 = vmatpush2.msra.mxu0 0.0
    %253 = vmatprep.subr.mxu0 0.0
    %254 = vmatpush2.msra.mxu0 0.0
    %255 = vmatprep.subr.mxu0 0.0
    %256 = vmatpush2.msra.mxu0 0.0
    %257 = vmatprep.subr.mxu0 0.0
    %258 = vmatpush2.msra.mxu0 0.0
    %259 = vmatprep.subr.mxu0 0.0
    %260 = vmatpush2.msra.mxu0 0.0
    %261 = vmatprep.subr.mxu0 0.0
    %262 = vmatpush2.msra.mxu0 0.0
    %263 = vmatprep.subr.mxu0 0.0
    %264 = vmatpush2.msra.mxu0 0.0
    %265 = vmatprep.subr.mxu0 0.0
    %266 = vmatpush2.msra.mxu0 0.0
    %267 = vmatprep.subr.mxu0 0.0
    %268 = vmatpush2.msra.mxu0 0.0
    %269 = vmatprep.subr.mxu0 0.0
    %270 = vmatpush2.msra.mxu0 0.0
    %271 = vmatprep.subr.mxu0 0.0
    %272 = vmatpush2.msra.mxu0 0.0
    %273 = vmatprep.subr.mxu0 0.0
    %274 = vmatpush2.msra.mxu0 0.0
    %275 = vmatprep.subr.mxu0 0.0
    %276 = vmatpush2.msra.mxu0 0.0
    %277 = vmatprep.subr.mxu0 0.0
    %278 = vmatpush2.msra.mxu0 0.0
    %279 = vmatprep.subr.mxu0 0.0
    %280 = vmatpush2.msra.mxu0 0.0
    %281 = vmatprep.mubr.f32.mxu0 0.0
    %282 = vmatmul.mubr.f32.gmra.mxu0 %v206
    %v283 = vpop.f32.mrf.mxu0
    %v284 = vadd.f32 0.0, %v283
    %v285 = vpop.f32.mrf.mxu0
    %286 = vmatprep.mubr.f32.mxu0 0.0
    %287 = vmatmul.mubr.f32.gmra.mxu0 %v209
    %v288 = vpop.f32.mrf.mxu0
    %v289 = vadd.f32 0.0, %v288
    %v290 = vpop.f32.mrf.mxu0
    %291 = vmatprep.mubr.f32.mxu0 0.0
    %292 = vmatmul.mubr.f32.gmra.mxu0 %v212
    %v293 = vpop.f32.mrf.mxu0
    %v294 = vadd.f32 0.0, %v293
    %v295 = vpop.f32.mrf.mxu0
    %296 = vmatprep.mubr.f32.mxu0 0.0
    %297 = vmatmul.mubr.f32.gmra.mxu0 %v215
    %v298 = vpop.f32.mrf.mxu0
    %v299 = vadd.f32 0.0, %v298
    %v300 = vpop.f32.mrf.mxu0
    %301 = vdwg.mxu0
    %v302 = vld [vmem:[#allocation10] sm:$0xff]
    %v303 = vld [vmem:[#allocation10 + $0x8] sm:$0xff]
    %v304 = vld [vmem:[#allocation10 + $0x10] sm:$0xff]
    %305 = vmatprep.subr.mxu0 0.0
    %306 = vmatpush1.msra.mxu0 0.0
    %307 = vmatprep.subr.mxu0 0.0
    %308 = vmatpush1.msra.mxu0 0.0
    %309 = vmatprep.subr.mxu0 0.0
    %310 = vmatpush1.msra.mxu0 0.0
    %311 = vmatprep.subr.mxu0 0.0
    %312 = vmatpush1.msra.mxu0 0.0
    %313 = vmatprep.subr.mxu0 0.0
    %314 = vmatpush1.msra.mxu0 0.0
    %315 = vmatprep.subr.mxu0 0.0
    %316 = vmatpush1.msra.mxu0 0.0
    %317 = vmatprep.subr.mxu0 0.0
    %318 = vmatpush1.msra.mxu0 0.0
    %319 = vmatprep.subr.mxu0 0.0
    %320 = vmatpush1.msra.mxu0 0.0
    %321 = vmatprep.subr.mxu0 0.0
    %322 = vmatpush1.msra.mxu0 0.0
    %323 = vmatprep.subr.mxu0 0.0
    %324 = vmatpush1.msra.mxu0 0.0
    %325 = vmatprep.subr.mxu0 0.0
    %326 = vmatpush1.msra.mxu0 0.0
    %327 = vmatprep.subr.mxu0 0.0
    %328 = vmatpush1.msra.mxu0 0.0
    %329 = vmatprep.subr.mxu0 0.0
    %330 = vmatpush1.msra.mxu0 0.0
    %331 = vmatprep.subr.mxu0 0.0
    %332 = vmatpush1.msra.mxu0 %v304
    %333 = vmatprep.subr.mxu0 0.0
    %334 = vmatpush1.msra.mxu0 %v303
    %335 = vmatprep.subr.mxu0 0.0
    %336 = vmatpush1.msra.mxu0 %v302
    %337 = vmatprep.subr.mxu0 0.0
    %338 = vmatpush2.msra.mxu0 0.0
    %339 = vmatprep.subr.mxu0 0.0
    %340 = vmatpush2.msra.mxu0 0.0
    %341 = vmatprep.subr.mxu0 0.0
    %342 = vmatpush2.msra.mxu0 0.0
    %343 = vmatprep.subr.mxu0 0.0
    %344 = vmatpush2.msra.mxu0 0.0
    %345 = vmatprep.subr.mxu0 0.0
    %346 = vmatpush2.msra.mxu0 0.0
    %347 = vmatprep.subr.mxu0 0.0
    %348 = vmatpush2.msra.mxu0 0.0
    %349 = vmatprep.subr.mxu0 0.0
    %350 = vmatpush2.msra.mxu0 0.0
    %351 = vmatprep.subr.mxu0 0.0
    %352 = vmatpush2.msra.mxu0 0.0
    %353 = vmatprep.subr.mxu0 0.0
    %354 = vmatpush2.msra.mxu0 0.0
    %355 = vmatprep.subr.mxu0 0.0
    %356 = vmatpush2.msra.mxu0 0.0
    %357 = vmatprep.subr.mxu0 0.0
    %358 = vmatpush2.msra.mxu0 0.0
    %359 = vmatprep.subr.mxu0 0.0
    %360 = vmatpush2.msra.mxu0 0.0
    %361 = vmatprep.subr.mxu0 0.0
    %362 = vmatpush2.msra.mxu0 0.0
    %363 = vmatprep.subr.mxu0 0.0
    %364 = vmatpush2.msra.mxu0 0.0
    %365 = vmatprep.subr.mxu0 0.0
    %366 = vmatpush2.msra.mxu0 0.0
    %367 = vmatprep.subr.mxu0 0.0
    %368 = vmatpush2.msra.mxu0 0.0
    %369 = vmatprep.mubr.f32.mxu0 0.0
    %370 = vmatmul.mubr.f32.gmra.mxu0 %v206
    %v371 = vpop.f32.mrf.mxu0
    %v372 = vadd.f32 0.0, %v371
    %v373 = vpop.f32.mrf.mxu0
    %374 = vmatprep.mubr.f32.mxu0 0.0
    %375 = vmatmul.mubr.f32.gmra.mxu0 %v209
    %v376 = vpop.f32.mrf.mxu0
    %v377 = vadd.f32 0.0, %v376
    %v378 = vpop.f32.mrf.mxu0
    %379 = vmatprep.mubr.f32.mxu0 0.0
    %380 = vmatmul.mubr.f32.gmra.mxu0 %v212
    %v381 = vpop.f32.mrf.mxu0
    %v382 = vadd.f32 0.0, %v381
    %v383 = vpop.f32.mrf.mxu0
    %384 = vmatprep.mubr.f32.mxu0 0.0
    %385 = vmatmul.mubr.f32.gmra.mxu0 %v215
    %v386 = vpop.f32.mrf.mxu0
    %v387 = vadd.f32 0.0, %v386
    %v388 = vpop.f32.mrf.mxu0
    %389 = vdwg.mxu0
    %vm390 = vcmask 64512
    %v392 = vsel %vm390, %v193, 0
    %v395 = vsel %vm390, %v284, 0
    %v398 = vsel %vm390, %v289, 0
    %400 = vmatprep.subr.mxu0 0.0
    %401 = vmatpush1.xpose.msra.mxu0 0.0
    %402 = vmatprep.subr.mxu0 0.0
    %403 = vmatpush1.xpose.msra.mxu0 0.0
    %404 = vmatprep.subr.mxu0 0.0
    %405 = vmatpush1.xpose.msra.mxu0 0.0
    %406 = vmatprep.subr.mxu0 0.0
    %407 = vmatpush1.xpose.msra.mxu0 0.0
    %408 = vmatprep.subr.mxu0 0.0
    %409 = vmatpush1.xpose.msra.mxu0 0.0
    %410 = vmatprep.subr.mxu0 0.0
    %411 = vmatpush1.xpose.msra.mxu0 0.0
    %412 = vmatprep.subr.mxu0 0.0
    %413 = vmatpush1.xpose.msra.mxu0 0.0
    %414 = vmatprep.subr.mxu0 0.0
    %415 = vmatpush1.xpose.msra.mxu0 0.0
    %416 = vmatprep.subr.mxu0 0.0
    %417 = vmatpush1.xpose.msra.mxu0 0.0
    %418 = vmatprep.subr.mxu0 0.0
    %419 = vmatpush1.xpose.msra.mxu0 0.0
    %420 = vmatprep.subr.mxu0 0.0
    %421 = vmatpush1.xpose.msra.mxu0 0.0
    %422 = vmatprep.subr.mxu0 0.0
    %423 = vmatpush1.xpose.msra.mxu0 0.0
    %424 = vmatprep.subr.mxu0 0.0
    %425 = vmatpush1.xpose.msra.mxu0 0.0
    %426 = vmatprep.subr.mxu0 0.0
    %427 = vmatpush1.xpose.msra.mxu0 0.0
    %428 = vmatprep.subr.mxu0 0.0
    %429 = vmatpush1.xpose.msra.mxu0 %v398
    %430 = vmatprep.subr.mxu0 0.0
    %431 = vmatpush1.xpose.msra.mxu0 %v395
    %432 = vmatprep.subr.mxu0 0.0
    %433 = vmatpush2.xpose.msra.mxu0 0.0
    %434 = vmatprep.subr.mxu0 0.0
    %435 = vmatpush2.xpose.msra.mxu0 0.0
    %436 = vmatprep.subr.mxu0 0.0
    %437 = vmatpush2.xpose.msra.mxu0 0.0
    %438 = vmatprep.subr.mxu0 0.0
    %439 = vmatpush2.xpose.msra.mxu0 0.0
    %440 = vmatprep.subr.mxu0 0.0
    %441 = vmatpush2.xpose.msra.mxu0 0.0
    %442 = vmatprep.subr.mxu0 0.0
    %443 = vmatpush2.xpose.msra.mxu0 0.0
    %444 = vmatprep.subr.mxu0 0.0
    %445 = vmatpush2.xpose.msra.mxu0 0.0
    %446 = vmatprep.subr.mxu0 0.0
    %447 = vmatpush2.xpose.msra.mxu0 0.0
    %448 = vmatprep.subr.mxu0 0.0
    %449 = vmatpush2.xpose.msra.mxu0 0.0
    %450 = vmatprep.subr.mxu0 0.0
    %451 = vmatpush2.xpose.msra.mxu0 0.0
    %452 = vmatprep.subr.mxu0 0.0
    %453 = vmatpush2.xpose.msra.mxu0 0.0
    %454 = vmatprep.subr.mxu0 0.0
    %455 = vmatpush2.xpose.msra.mxu0 0.0
    %456 = vmatprep.subr.mxu0 0.0
    %457 = vmatpush2.xpose.msra.mxu0 0.0
    %458 = vmatprep.subr.mxu0 0.0
    %459 = vmatpush2.xpose.msra.mxu0 0.0
    %460 = vmatprep.subr.mxu0 0.0
    %461 = vmatpush2.xpose.msra.mxu0 0.0
    %462 = vmatprep.subr.mxu0 0.0
    %463 = vmatpush2.xpose.msra.mxu0 0.0
    %464 = vmatprep.mubr.f32.mxu0 0.0
    %465 = vmatmul.mubr.f32.gmra.mxu0 %v392
    %v466 = vpop.f32.mrf.mxu0
    %v467 = vadd.f32 0.0, %v466
    %v468 = vpop.f32.mrf.mxu0
    %469 = vdwg.mxu0
    %v471 = vsel %vm390, %v198, 0
    %v474 = vsel %vm390, %v294, 0
    %v477 = vsel %vm390, %v299, 0
    %479 = vmatprep.subr.mxu0 0.0
    %480 = vmatpush1.xpose.msra.mxu0 0.0
    %481 = vmatprep.subr.mxu0 0.0
    %482 = vmatpush1.xpose.msra.mxu0 0.0
    %483 = vmatprep.subr.mxu0 0.0
    %484 = vmatpush1.xpose.msra.mxu0 0.0
    %485 = vmatprep.subr.mxu0 0.0
    %486 = vmatpush1.xpose.msra.mxu0 0.0
    %487 = vmatprep.subr.mxu0 0.0
    %488 = vmatpush1.xpose.msra.mxu0 0.0
    %489 = vmatprep.subr.mxu0 0.0
    %490 = vmatpush1.xpose.msra.mxu0 0.0
    %491 = vmatprep.subr.mxu0 0.0
    %492 = vmatpush1.xpose.msra.mxu0 0.0
    %493 = vmatprep.subr.mxu0 0.0
    %494 = vmatpush1.xpose.msra.mxu0 0.0
    %495 = vmatprep.subr.mxu0 0.0
    %496 = vmatpush1.xpose.msra.mxu0 0.0
    %497 = vmatprep.subr.mxu0 0.0
    %498 = vmatpush1.xpose.msra.mxu0 0.0
    %499 = vmatprep.subr.mxu0 0.0
    %500 = vmatpush1.xpose.msra.mxu0 0.0
    %501 = vmatprep.subr.mxu0 0.0
    %502 = vmatpush1.xpose.msra.mxu0 0.0
    %503 = vmatprep.subr.mxu0 0.0
    %504 = vmatpush1.xpose.msra.mxu0 0.0
    %505 = vmatprep.subr.mxu0 0.0
    %506 = vmatpush1.xpose.msra.mxu0 0.0
    %507 = vmatprep.subr.mxu0 0.0
    %508 = vmatpush1.xpose.msra.mxu0 %v477
    %509 = vmatprep.subr.mxu0 0.0
    %510 = vmatpush1.xpose.msra.mxu0 %v474
    %511 = vmatprep.subr.mxu0 0.0
    %512 = vmatpush2.xpose.msra.mxu0 0.0
    %513 = vmatprep.subr.mxu0 0.0
    %514 = vmatpush2.xpose.msra.mxu0 0.0
    %515 = vmatprep.subr.mxu0 0.0
    %516 = vmatpush2.xpose.msra.mxu0 0.0
    %517 = vmatprep.subr.mxu0 0.0
    %518 = vmatpush2.xpose.msra.mxu0 0.0
    %519 = vmatprep.subr.mxu0 0.0
    %520 = vmatpush2.xpose.msra.mxu0 0.0
    %521 = vmatprep.subr.mxu0 0.0
    %522 = vmatpush2.xpose.msra.mxu0 0.0
    %523 = vmatprep.subr.mxu0 0.0
    %524 = vmatpush2.xpose.msra.mxu0 0.0
    %525 = vmatprep.subr.mxu0 0.0
    %526 = vmatpush2.xpose.msra.mxu0 0.0
    %527 = vmatprep.subr.mxu0 0.0
    %528 = vmatpush2.xpose.msra.mxu0 0.0
    %529 = vmatprep.subr.mxu0 0.0
    %530 = vmatpush2.xpose.msra.mxu0 0.0
    %531 = vmatprep.subr.mxu0 0.0
    %532 = vmatpush2.xpose.msra.mxu0 0.0
    %533 = vmatprep.subr.mxu0 0.0
    %534 = vmatpush2.xpose.msra.mxu0 0.0
    %535 = vmatprep.subr.mxu0 0.0
    %536 = vmatpush2.xpose.msra.mxu0 0.0
    %537 = vmatprep.subr.mxu0 0.0
    %538 = vmatpush2.xpose.msra.mxu0 0.0
    %539 = vmatprep.subr.mxu0 0.0
    %540 = vmatpush2.xpose.msra.mxu0 0.0
    %541 = vmatprep.subr.mxu0 0.0
    %542 = vmatpush2.xpose.msra.mxu0 0.0
    %543 = vmatprep.mubr.f32.mxu0 0.0
    %544 = vmatmul.mubr.f32.gmra.mxu0 %v471
    %v545 = vpop.f32.mrf.mxu0
    %v546 = vadd.f32 0.0, %v545
    %v547 = vpop.f32.mrf.mxu0
    %548 = vdwg.mxu0
    %vm549 = vcmask 130048
    %v550 = vsel %vm549, %v467, -inf
    %551 = vmax.xlane.f32.xlu0 %v550
    %v552 = vpop.xlane.xlu0 %551
    %v553 = vsel %vm549, %v546, -inf
    %554 = vmax.xlane.f32.xlu0 %v553
    %v555 = vpop.xlane.xlu0 %554
    %v556 = vsub.f32 %v467, %v552
    %v557 = vsub.f32 %v546, %v555
    %v558 = vmul.f32 %v556, 1.442695
    %v559 = vpow.pop %v558
    %v560 = vmul.f32 %v557, 1.442695
    %v561 = vpow.pop %v560
    %v562 = vsel %vm549, %v559, 0.0
    %563 = vadd.xlane.f32.xlu0 %v562
    %v564 = vpop.xlane.xlu0 %563
    %v565 = vsel %vm549, %v561, 0.0
    %566 = vadd.xlane.f32.xlu0 %v565
    %v567 = vpop.xlane.xlu0 %566
    %v568 = vrcp.pop %v564
    %v569 = vrcp.pop %v567
    %v570 = vmul.f32 %v559, %v568
    %v571 = vmul.f32 %v561, %v569
    %v573 = vsel %vm549, %v570, 0
    %575 = vmatprep.subr.mxu0 0.0
    %576 = vmatpush1.msra.mxu0 0.0
    %577 = vmatprep.subr.mxu0 0.0
    %578 = vmatpush1.msra.mxu0 0.0
    %579 = vmatprep.subr.mxu0 0.0
    %580 = vmatpush1.msra.mxu0 0.0
    %581 = vmatprep.subr.mxu0 0.0
    %582 = vmatpush1.msra.mxu0 0.0
    %583 = vmatprep.subr.mxu0 0.0
    %584 = vmatpush1.msra.mxu0 0.0
    %585 = vmatprep.subr.mxu0 0.0
    %586 = vmatpush1.msra.mxu0 0.0
    %587 = vmatprep.subr.mxu0 0.0
    %588 = vmatpush1.msra.mxu0 0.0
    %589 = vmatprep.subr.mxu0 0.0
    %590 = vmatpush1.msra.mxu0 0.0
    %591 = vmatprep.subr.mxu0 0.0
    %592 = vmatpush1.msra.mxu0 0.0
    %593 = vmatprep.subr.mxu0 0.0
    %594 = vmatpush1.msra.mxu0 0.0
    %595 = vmatprep.subr.mxu0 0.0
    %596 = vmatpush1.msra.mxu0 0.0
    %597 = vmatprep.subr.mxu0 0.0
    %598 = vmatpush1.msra.mxu0 0.0
    %599 = vmatprep.subr.mxu0 0.0
    %600 = vmatpush1.msra.mxu0 0.0
    %601 = vmatprep.subr.mxu0 0.0
    %602 = vmatpush1.msra.mxu0 0.0
    %603 = vmatprep.subr.mxu0 0.0
    %604 = vmatpush1.msra.mxu0 %v377
    %605 = vmatprep.subr.mxu0 0.0
    %606 = vmatpush1.msra.mxu0 %v372
    %607 = vmatprep.subr.mxu0 0.0
    %608 = vmatpush2.msra.mxu0 0.0
    %609 = vmatprep.subr.mxu0 0.0
    %610 = vmatpush2.msra.mxu0 0.0
    %611 = vmatprep.subr.mxu0 0.0
    %612 = vmatpush2.msra.mxu0 0.0
    %613 = vmatprep.subr.mxu0 0.0
    %614 = vmatpush2.msra.mxu0 0.0
    %615 = vmatprep.subr.mxu0 0.0
    %616 = vmatpush2.msra.mxu0 0.0
    %617 = vmatprep.subr.mxu0 0.0
    %618 = vmatpush2.msra.mxu0 0.0
    %619 = vmatprep.subr.mxu0 0.0
    %620 = vmatpush2.msra.mxu0 0.0
    %621 = vmatprep.subr.mxu0 0.0
    %622 = vmatpush2.msra.mxu0 0.0
    %623 = vmatprep.subr.mxu0 0.0
    %624 = vmatpush2.msra.mxu0 0.0
    %625 = vmatprep.subr.mxu0 0.0
    %626 = vmatpush2.msra.mxu0 0.0
    %627 = vmatprep.subr.mxu0 0.0
    %628 = vmatpush2.msra.mxu0 0.0
    %629 = vmatprep.subr.mxu0 0.0
    %630 = vmatpush2.msra.mxu0 0.0
    %631 = vmatprep.subr.mxu0 0.0
    %632 = vmatpush2.msra.mxu0 0.0
    %633 = vmatprep.subr.mxu0 0.0
    %634 = vmatpush2.msra.mxu0 0.0
    %635 = vmatprep.subr.mxu0 0.0
    %636 = vmatpush2.msra.mxu0 0.0
    %637 = vmatprep.subr.mxu0 0.0
    %638 = vmatpush2.msra.mxu0 0.0
    %639 = vmatprep.mubr.f32.mxu0 0.0
    %640 = vmatmul.mubr.f32.gmra.mxu0 %v573
    %v641 = vpop.f32.mrf.mxu0
    %v642 = vadd.f32 0.0, %v641
    %v643 = vpop.f32.mrf.mxu0
    %644 = vdwg.mxu0
    %v646 = vsel %vm549, %v571, 0
    %648 = vmatprep.subr.mxu0 0.0
    %649 = vmatpush1.msra.mxu0 0.0
    %650 = vmatprep.subr.mxu0 0.0
    %651 = vmatpush1.msra.mxu0 0.0
    %652 = vmatprep.subr.mxu0 0.0
    %653 = vmatpush1.msra.mxu0 0.0
    %654 = vmatprep.subr.mxu0 0.0
    %655 = vmatpush1.msra.mxu0 0.0
    %656 = vmatprep.subr.mxu0 0.0
    %657 = vmatpush1.msra.mxu0 0.0
    %658 = vmatprep.subr.mxu0 0.0
    %659 = vmatpush1.msra.mxu0 0.0
    %660 = vmatprep.subr.mxu0 0.0
    %661 = vmatpush1.msra.mxu0 0.0
    %662 = vmatprep.subr.mxu0 0.0
    %663 = vmatpush1.msra.mxu0 0.0
    %664 = vmatprep.subr.mxu0 0.0
    %665 = vmatpush1.msra.mxu0 0.0
    %666 = vmatprep.subr.mxu0 0.0
    %667 = vmatpush1.msra.mxu0 0.0
    %668 = vmatprep.subr.mxu0 0.0
    %669 = vmatpush1.msra.mxu0 0.0
    %670 = vmatprep.subr.mxu0 0.0
    %671 = vmatpush1.msra.mxu0 0.0
    %672 = vmatprep.subr.mxu0 0.0
    %673 = vmatpush1.msra.mxu0 0.0
    %674 = vmatprep.subr.mxu0 0.0
    %675 = vmatpush1.msra.mxu0 0.0
    %676 = vmatprep.subr.mxu0 0.0
    %677 = vmatpush1.msra.mxu0 %v387
    %678 = vmatprep.subr.mxu0 0.0
    %679 = vmatpush1.msra.mxu0 %v382
    %680 = vmatprep.subr.mxu0 0.0
    %681 = vmatpush2.msra.mxu0 0.0
    %682 = vmatprep.subr.mxu0 0.0
    %683 = vmatpush2.msra.mxu0 0.0
    %684 = vmatprep.subr.mxu0 0.0
    %685 = vmatpush2.msra.mxu0 0.0
    %686 = vmatprep.subr.mxu0 0.0
    %687 = vmatpush2.msra.mxu0 0.0
    %688 = vmatprep.subr.mxu0 0.0
    %689 = vmatpush2.msra.mxu0 0.0
    %690 = vmatprep.subr.mxu0 0.0
    %691 = vmatpush2.msra.mxu0 0.0
    %692 = vmatprep.subr.mxu0 0.0
    %693 = vmatpush2.msra.mxu0 0.0
    %694 = vmatprep.subr.mxu0 0.0
    %695 = vmatpush2.msra.mxu0 0.0
    %696 = vmatprep.subr.mxu0 0.0
    %697 = vmatpush2.msra.mxu0 0.0
    %698 = vmatprep.subr.mxu0 0.0
    %699 = vmatpush2.msra.mxu0 0.0
    %700 = vmatprep.subr.mxu0 0.0
    %701 = vmatpush2.msra.mxu0 0.0
    %702 = vmatprep.subr.mxu0 0.0
    %703 = vmatpush2.msra.mxu0 0.0
    %704 = vmatprep.subr.mxu0 0.0
    %705 = vmatpush2.msra.mxu0 0.0
    %706 = vmatprep.subr.mxu0 0.0
    %707 = vmatpush2.msra.mxu0 0.0
    %708 = vmatprep.subr.mxu0 0.0
    %709 = vmatpush2.msra.mxu0 0.0
    %710 = vmatprep.subr.mxu0 0.0
    %711 = vmatpush2.msra.mxu0 0.0
    %712 = vmatprep.mubr.f32.mxu0 0.0
    %713 = vmatmul.mubr.f32.gmra.mxu0 %v646
    %v714 = vpop.f32.mrf.mxu0
    %v715 = vadd.f32 0.0, %v714
    %v716 = vpop.f32.mrf.mxu0
    %717 = vdwg.mxu0
    %718 = vrot.lane.b32.xlu0 %v193, 120
    %v719 = vpop.permute.xlu0 %718
    %720 = vrot.lane.b32.xlu0 %v284, 120
    %v721 = vpop.permute.xlu0 %720
    %722 = vrot.lane.b32.xlu0 %v289, 120
    %v723 = vpop.permute.xlu0 %722
    %v724 = vsel %vm390, %v719, 0
    %v726 = vsel %vm390, %v721, 0
    %v728 = vsel %vm390, %v723, 0
    %730 = vmatprep.subr.mxu0 0.0
    %731 = vmatpush1.xpose.msra.mxu0 0.0
    %732 = vmatprep.subr.mxu0 0.0
    %733 = vmatpush1.xpose.msra.mxu0 0.0
    %734 = vmatprep.subr.mxu0 0.0
    %735 = vmatpush1.xpose.msra.mxu0 0.0
    %736 = vmatprep.subr.mxu0 0.0
    %737 = vmatpush1.xpose.msra.mxu0 0.0
    %738 = vmatprep.subr.mxu0 0.0
    %739 = vmatpush1.xpose.msra.mxu0 0.0
    %740 = vmatprep.subr.mxu0 0.0
    %741 = vmatpush1.xpose.msra.mxu0 0.0
    %742 = vmatprep.subr.mxu0 0.0
    %743 = vmatpush1.xpose.msra.mxu0 0.0
    %744 = vmatprep.subr.mxu0 0.0
    %745 = vmatpush1.xpose.msra.mxu0 0.0
    %746 = vmatprep.subr.mxu0 0.0
    %747 = vmatpush1.xpose.msra.mxu0 0.0
    %748 = vmatprep.subr.mxu0 0.0
    %749 = vmatpush1.xpose.msra.mxu0 0.0
    %750 = vmatprep.subr.mxu0 0.0
    %751 = vmatpush1.xpose.msra.mxu0 0.0
    %752 = vmatprep.subr.mxu0 0.0
    %753 = vmatpush1.xpose.msra.mxu0 0.0
    %754 = vmatprep.subr.mxu0 0.0
    %755 = vmatpush1.xpose.msra.mxu0 0.0
    %756 = vmatprep.subr.mxu0 0.0
    %757 = vmatpush1.xpose.msra.mxu0 0.0
    %758 = vmatprep.subr.mxu0 0.0
    %759 = vmatpush1.xpose.msra.mxu0 %v728
    %760 = vmatprep.subr.mxu0 0.0
    %761 = vmatpush1.xpose.msra.mxu0 %v726
    %762 = vmatprep.subr.mxu0 0.0
    %763 = vmatpush2.xpose.msra.mxu0 0.0
    %764 = vmatprep.subr.mxu0 0.0
    %765 = vmatpush2.xpose.msra.mxu0 0.0
    %766 = vmatprep.subr.mxu0 0.0
    %767 = vmatpush2.xpose.msra.mxu0 0.0
    %768 = vmatprep.subr.mxu0 0.0
    %769 = vmatpush2.xpose.msra.mxu0 0.0
    %770 = vmatprep.subr.mxu0 0.0
    %771 = vmatpush2.xpose.msra.mxu0 0.0
    %772 = vmatprep.subr.mxu0 0.0
    %773 = vmatpush2.xpose.msra.mxu0 0.0
    %774 = vmatprep.subr.mxu0 0.0
    %775 = vmatpush2.xpose.msra.mxu0 0.0
    %776 = vmatprep.subr.mxu0 0.0
    %777 = vmatpush2.xpose.msra.mxu0 0.0
    %778 = vmatprep.subr.mxu0 0.0
    %779 = vmatpush2.xpose.msra.mxu0 0.0
    %780 = vmatprep.subr.mxu0 0.0
    %781 = vmatpush2.xpose.msra.mxu0 0.0
    %782 = vmatprep.subr.mxu0 0.0
    %783 = vmatpush2.xpose.msra.mxu0 0.0
    %784 = vmatprep.subr.mxu0 0.0
    %785 = vmatpush2.xpose.msra.mxu0 0.0
    %786 = vmatprep.subr.mxu0 0.0
    %787 = vmatpush2.xpose.msra.mxu0 0.0
    %788 = vmatprep.subr.mxu0 0.0
    %789 = vmatpush2.xpose.msra.mxu0 0.0
    %790 = vmatprep.subr.mxu0 0.0
    %791 = vmatpush2.xpose.msra.mxu0 0.0
    %792 = vmatprep.subr.mxu0 0.0
    %793 = vmatpush2.xpose.msra.mxu0 0.0
    %794 = vmatprep.mubr.f32.mxu0 0.0
    %795 = vmatmul.mubr.f32.gmra.mxu0 %v724
    %v796 = vpop.f32.mrf.mxu0
    %v797 = vadd.f32 0.0, %v796
    %v798 = vpop.f32.mrf.mxu0
    %799 = vdwg.mxu0
    %800 = vrot.lane.b32.xlu0 %v198, 120
    %v801 = vpop.permute.xlu0 %800
    %802 = vrot.lane.b32.xlu0 %v294, 120
    %v803 = vpop.permute.xlu0 %802
    %804 = vrot.lane.b32.xlu0 %v299, 120
    %v805 = vpop.permute.xlu0 %804
    %v806 = vsel %vm390, %v801, 0
    %v808 = vsel %vm390, %v803, 0
    %v810 = vsel %vm390, %v805, 0
    %812 = vmatprep.subr.mxu0 0.0
    %813 = vmatpush1.xpose.msra.mxu0 0.0
    %814 = vmatprep.subr.mxu0 0.0
    %815 = vmatpush1.xpose.msra.mxu0 0.0
    %816 = vmatprep.subr.mxu0 0.0
    %817 = vmatpush1.xpose.msra.mxu0 0.0
    %818 = vmatprep.subr.mxu0 0.0
    %819 = vmatpush1.xpose.msra.mxu0 0.0
    %820 = vmatprep.subr.mxu0 0.0
    %821 = vmatpush1.xpose.msra.mxu0 0.0
    %822 = vmatprep.subr.mxu0 0.0
    %823 = vmatpush1.xpose.msra.mxu0 0.0
    %824 = vmatprep.subr.mxu0 0.0
    %825 = vmatpush1.xpose.msra.mxu0 0.0
    %826 = vmatprep.subr.mxu0 0.0
    %827 = vmatpush1.xpose.msra.mxu0 0.0
    %828 = vmatprep.subr.mxu0 0.0
    %829 = vmatpush1.xpose.msra.mxu0 0.0
    %830 = vmatprep.subr.mxu0 0.0
    %831 = vmatpush1.xpose.msra.mxu0 0.0
    %832 = vmatprep.subr.mxu0 0.0
    %833 = vmatpush1.xpose.msra.mxu0 0.0
    %834 = vmatprep.subr.mxu0 0.0
    %835 = vmatpush1.xpose.msra.mxu0 0.0
    %836 = vmatprep.subr.mxu0 0.0
    %837 = vmatpush1.xpose.msra.mxu0 0.0
    %838 = vmatprep.subr.mxu0 0.0
    %839 = vmatpush1.xpose.msra.mxu0 0.0
    %840 = vmatprep.subr.mxu0 0.0
    %841 = vmatpush1.xpose.msra.mxu0 %v810
    %842 = vmatprep.subr.mxu0 0.0
    %843 = vmatpush1.xpose.msra.mxu0 %v808
    %844 = vmatprep.subr.mxu0 0.0
    %845 = vmatpush2.xpose.msra.mxu0 0.0
    %846 = vmatprep.subr.mxu0 0.0
    %847 = vmatpush2.xpose.msra.mxu0 0.0
    %848 = vmatprep.subr.mxu0 0.0
    %849 = vmatpush2.xpose.msra.mxu0 0.0
    %850 = vmatprep.subr.mxu0 0.0
    %851 = vmatpush2.xpose.msra.mxu0 0.0
    %852 = vmatprep.subr.mxu0 0.0
    %853 = vmatpush2.xpose.msra.mxu0 0.0
    %854 = vmatprep.subr.mxu0 0.0
    %855 = vmatpush2.xpose.msra.mxu0 0.0
    %856 = vmatprep.subr.mxu0 0.0
    %857 = vmatpush2.xpose.msra.mxu0 0.0
    %858 = vmatprep.subr.mxu0 0.0
    %859 = vmatpush2.xpose.msra.mxu0 0.0
    %860 = vmatprep.subr.mxu0 0.0
    %861 = vmatpush2.xpose.msra.mxu0 0.0
    %862 = vmatprep.subr.mxu0 0.0
    %863 = vmatpush2.xpose.msra.mxu0 0.0
    %864 = vmatprep.subr.mxu0 0.0
    %865 = vmatpush2.xpose.msra.mxu0 0.0
    %866 = vmatprep.subr.mxu0 0.0
    %867 = vmatpush2.xpose.msra.mxu0 0.0
    %868 = vmatprep.subr.mxu0 0.0
    %869 = vmatpush2.xpose.msra.mxu0 0.0
    %870 = vmatprep.subr.mxu0 0.0
    %871 = vmatpush2.xpose.msra.mxu0 0.0
    %872 = vmatprep.subr.mxu0 0.0
    %873 = vmatpush2.xpose.msra.mxu0 0.0
    %874 = vmatprep.subr.mxu0 0.0
    %875 = vmatpush2.xpose.msra.mxu0 0.0
    %876 = vmatprep.mubr.f32.mxu0 0.0
    %877 = vmatmul.mubr.f32.gmra.mxu0 %v806
    %v878 = vpop.f32.mrf.mxu0
    %v879 = vadd.f32 0.0, %v878
    %v880 = vpop.f32.mrf.mxu0
    %881 = vdwg.mxu0
    %v882 = vsel %vm549, %v797, -inf
    %883 = vmax.xlane.f32.xlu0 %v882
    %v884 = vpop.xlane.xlu0 %883
    %v885 = vsel %vm549, %v879, -inf
    %886 = vmax.xlane.f32.xlu0 %v885
    %v887 = vpop.xlane.xlu0 %886
    %v888 = vsub.f32 %v797, %v884
    %v889 = vsub.f32 %v879, %v887
    %v890 = vmul.f32 %v888, 1.442695
    %v891 = vpow.pop %v890
    %v892 = vmul.f32 %v889, 1.442695
    %v893 = vpow.pop %v892
    %v894 = vsel %vm549, %v891, 0.0
    %895 = vadd.xlane.f32.xlu0 %v894
    %v896 = vpop.xlane.xlu0 %895
    %v897 = vsel %vm549, %v893, 0.0
    %898 = vadd.xlane.f32.xlu0 %v897
    %v899 = vpop.xlane.xlu0 %898
    %v900 = vrcp.pop %v896
    %v901 = vrcp.pop %v899
    %v902 = vmul.f32 %v891, %v900
    %v903 = vmul.f32 %v893, %v901
    %906 = vrot.lane.b32.xlu0 %v372, 120
    %v907 = vpop.permute.xlu0 %906
    %908 = vrot.lane.b32.xlu0 %v377, 120
    %v909 = vpop.permute.xlu0 %908
    %v913 = vsel %vm549, %v902, 0
    %915 = vmatprep.subr.mxu0 0.0
    %916 = vmatpush1.msra.mxu0 0.0
    %917 = vmatprep.subr.mxu0 0.0
    %918 = vmatpush1.msra.mxu0 0.0
    %919 = vmatprep.subr.mxu0 0.0
    %920 = vmatpush1.msra.mxu0 0.0
    %921 = vmatprep.subr.mxu0 0.0
    %922 = vmatpush1.msra.mxu0 0.0
    %923 = vmatprep.subr.mxu0 0.0
    %924 = vmatpush1.msra.mxu0 0.0
    %925 = vmatprep.subr.mxu0 0.0
    %926 = vmatpush1.msra.mxu0 0.0
    %927 = vmatprep.subr.mxu0 0.0
    %928 = vmatpush1.msra.mxu0 0.0
    %929 = vmatprep.subr.mxu0 0.0
    %930 = vmatpush1.msra.mxu0 0.0
    %931 = vmatprep.subr.mxu0 0.0
    %932 = vmatpush1.msra.mxu0 0.0
    %933 = vmatprep.subr.mxu0 0.0
    %934 = vmatpush1.msra.mxu0 0.0
    %935 = vmatprep.subr.mxu0 0.0
    %936 = vmatpush1.msra.mxu0 0.0
    %937 = vmatprep.subr.mxu0 0.0
    %938 = vmatpush1.msra.mxu0 0.0
    %939 = vmatprep.subr.mxu0 0.0
    %940 = vmatpush1.msra.mxu0 0.0
    %941 = vmatprep.subr.mxu0 0.0
    %942 = vmatpush1.msra.mxu0 0.0
    %943 = vmatprep.subr.mxu0 0.0
    %944 = vmatpush1.msra.mxu0 %v909
    %945 = vmatprep.subr.mxu0 0.0
    %946 = vmatpush1.msra.mxu0 %v907
    %947 = vmatprep.subr.mxu0 0.0
    %948 = vmatpush2.msra.mxu0 0.0
    %949 = vmatprep.subr.mxu0 0.0
    %950 = vmatpush2.msra.mxu0 0.0
    %951 = vmatprep.subr.mxu0 0.0
    %952 = vmatpush2.msra.mxu0 0.0
    %953 = vmatprep.subr.mxu0 0.0
    %954 = vmatpush2.msra.mxu0 0.0
    %955 = vmatprep.subr.mxu0 0.0
    %956 = vmatpush2.msra.mxu0 0.0
    %957 = vmatprep.subr.mxu0 0.0
    %958 = vmatpush2.msra.mxu0 0.0
    %959 = vmatprep.subr.mxu0 0.0
    %960 = vmatpush2.msra.mxu0 0.0
    %961 = vmatprep.subr.mxu0 0.0
    %962 = vmatpush2.msra.mxu0 0.0
    %963 = vmatprep.subr.mxu0 0.0
    %964 = vmatpush2.msra.mxu0 0.0
    %965 = vmatprep.subr.mxu0 0.0
    %966 = vmatpush2.msra.mxu0 0.0
    %967 = vmatprep.subr.mxu0 0.0
    %968 = vmatpush2.msra.mxu0 0.0
    %969 = vmatprep.subr.mxu0 0.0
    %970 = vmatpush2.msra.mxu0 0.0
    %971 = vmatprep.subr.mxu0 0.0
    %972 = vmatpush2.msra.mxu0 0.0
    %973 = vmatprep.subr.mxu0 0.0
    %974 = vmatpush2.msra.mxu0 0.0
    %975 = vmatprep.subr.mxu0 0.0
    %976 = vmatpush2.msra.mxu0 0.0
    %977 = vmatprep.subr.mxu0 0.0
    %978 = vmatpush2.msra.mxu0 0.0
    %979 = vmatprep.mubr.f32.mxu0 0.0
    %980 = vmatmul.mubr.f32.gmra.mxu0 %v913
    %v981 = vpop.f32.mrf.mxu0
    %v982 = vadd.f32 0.0, %v981
    %v983 = vpop.f32.mrf.mxu0
    %984 = vdwg.mxu0
    %987 = vrot.lane.b32.xlu0 %v382, 120
    %v988 = vpop.permute.xlu0 %987
    %989 = vrot.lane.b32.xlu0 %v387, 120
    %v990 = vpop.permute.xlu0 %989
    %v994 = vsel %vm549, %v903, 0
    %996 = vmatprep.subr.mxu0 0.0
    %997 = vmatpush1.msra.mxu0 0.0
    %998 = vmatprep.subr.mxu0 0.0
    %999 = vmatpush1.msra.mxu0 0.0
    %1000 = vmatprep.subr.mxu0 0.0
    %1001 = vmatpush1.msra.mxu0 0.0
    %1002 = vmatprep.subr.mxu0 0.0
    %1003 = vmatpush1.msra.mxu0 0.0
    %1004 = vmatprep.subr.mxu0 0.0
    %1005 = vmatpush1.msra.mxu0 0.0
    %1006 = vmatprep.subr.mxu0 0.0
    %1007 = vmatpush1.msra.mxu0 0.0
    %1008 = vmatprep.subr.mxu0 0.0
    %1009 = vmatpush1.msra.mxu0 0.0
    %1010 = vmatprep.subr.mxu0 0.0
    %1011 = vmatpush1.msra.mxu0 0.0
    %1012 = vmatprep.subr.mxu0 0.0
    %1013 = vmatpush1.msra.mxu0 0.0
    %1014 = vmatprep.subr.mxu0 0.0
    %1015 = vmatpush1.msra.mxu0 0.0
    %1016 = vmatprep.subr.mxu0 0.0
    %1017 = vmatpush1.msra.mxu0 0.0
    %1018 = vmatprep.subr.mxu0 0.0
    %1019 = vmatpush1.msra.mxu0 0.0
    %1020 = vmatprep.subr.mxu0 0.0
    %1021 = vmatpush1.msra.mxu0 0.0
    %1022 = vmatprep.subr.mxu0 0.0
    %1023 = vmatpush1.msra.mxu0 0.0
    %1024 = vmatprep.subr.mxu0 0.0
    %1025 = vmatpush1.msra.mxu0 %v990
    %1026 = vmatprep.subr.mxu0 0.0
    %1027 = vmatpush1.msra.mxu0 %v988
    %1028 = vmatprep.subr.mxu0 0.0
    %1029 = vmatpush2.msra.mxu0 0.0
    %1030 = vmatprep.subr.mxu0 0.0
    %1031 = vmatpush2.msra.mxu0 0.0
    %1032 = vmatprep.subr.mxu0 0.0
    %1033 = vmatpush2.msra.mxu0 0.0
    %1034 = vmatprep.subr.mxu0 0.0
    %1035 = vmatpush2.msra.mxu0 0.0
    %1036 = vmatprep.subr.mxu0 0.0
    %1037 = vmatpush2.msra.mxu0 0.0
    %1038 = vmatprep.subr.mxu0 0.0
    %1039 = vmatpush2.msra.mxu0 0.0
    %1040 = vmatprep.subr.mxu0 0.0
    %1041 = vmatpush2.msra.mxu0 0.0
    %1042 = vmatprep.subr.mxu0 0.0
    %1043 = vmatpush2.msra.mxu0 0.0
    %1044 = vmatprep.subr.mxu0 0.0
    %1045 = vmatpush2.msra.mxu0 0.0
    %1046 = vmatprep.subr.mxu0 0.0
    %1047 = vmatpush2.msra.mxu0 0.0
    %1048 = vmatprep.subr.mxu0 0.0
    %1049 = vmatpush2.msra.mxu0 0.0
    %1050 = vmatprep.subr.mxu0 0.0
    %1051 = vmatpush2.msra.mxu0 0.0
    %1052 = vmatprep.subr.mxu0 0.0
    %1053 = vmatpush2.msra.mxu0 0.0
    %1054 = vmatprep.subr.mxu0 0.0
    %1055 = vmatpush2.msra.mxu0 0.0
    %1056 = vmatprep.subr.mxu0 0.0
    %1057 = vmatpush2.msra.mxu0 0.0
    %1058 = vmatprep.subr.mxu0 0.0
    %1059 = vmatpush2.msra.mxu0 0.0
    %1060 = vmatprep.mubr.f32.mxu0 0.0
    %1061 = vmatmul.mubr.f32.gmra.mxu0 %v994
    %v1062 = vpop.f32.mrf.mxu0
    %v1063 = vadd.f32 0.0, %v1062
    %v1064 = vpop.f32.mrf.mxu0
    %1065 = vdwg.mxu0
    %1066 = vrot.lane.b32.xlu0 %v193, 112
    %v1067 = vpop.permute.xlu0 %1066
    %1068 = vrot.lane.b32.xlu0 %v284, 112
    %v1069 = vpop.permute.xlu0 %1068
    %1070 = vrot.lane.b32.xlu0 %v289, 112
    %v1071 = vpop.permute.xlu0 %1070
    %v1072 = vsel %vm390, %v1067, 0
    %v1074 = vsel %vm390, %v1069, 0
    %v1076 = vsel %vm390, %v1071, 0
    %1078 = vmatprep.subr.mxu0 0.0
    %1079 = vmatpush1.xpose.msra.mxu0 0.0
    %1080 = vmatprep.subr.mxu0 0.0
    %1081 = vmatpush1.xpose.msra.mxu0 0.0
    %1082 = vmatprep.subr.mxu0 0.0
    %1083 = vmatpush1.xpose.msra.mxu0 0.0
    %1084 = vmatprep.subr.mxu0 0.0
    %1085 = vmatpush1.xpose.msra.mxu0 0.0
    %1086 = vmatprep.subr.mxu0 0.0
    %1087 = vmatpush1.xpose.msra.mxu0 0.0
    %1088 = vmatprep.subr.mxu0 0.0
    %1089 = vmatpush1.xpose.msra.mxu0 0.0
    %1090 = vmatprep.subr.mxu0 0.0
    %1091 = vmatpush1.xpose.msra.mxu0 0.0
    %1092 = vmatprep.subr.mxu0 0.0
    %1093 = vmatpush1.xpose.msra.mxu0 0.0
    %1094 = vmatprep.subr.mxu0 0.0
    %1095 = vmatpush1.xpose.msra.mxu0 0.0
    %1096 = vmatprep.subr.mxu0 0.0
    %1097 = vmatpush1.xpose.msra.mxu0 0.0
    %1098 = vmatprep.subr.mxu0 0.0
    %1099 = vmatpush1.xpose.msra.mxu0 0.0
    %1100 = vmatprep.subr.mxu0 0.0
    %1101 = vmatpush1.xpose.msra.mxu0 0.0
    %1102 = vmatprep.subr.mxu0 0.0
    %1103 = vmatpush1.xpose.msra.mxu0 0.0
    %1104 = vmatprep.subr.mxu0 0.0
    %1105 = vmatpush1.xpose.msra.mxu0 0.0
    %1106 = vmatprep.subr.mxu0 0.0
    %1107 = vmatpush1.xpose.msra.mxu0 %v1076
    %1108 = vmatprep.subr.mxu0 0.0
    %1109 = vmatpush1.xpose.msra.mxu0 %v1074
    %1110 = vmatprep.subr.mxu0 0.0
    %1111 = vmatpush2.xpose.msra.mxu0 0.0
    %1112 = vmatprep.subr.mxu0 0.0
    %1113 = vmatpush2.xpose.msra.mxu0 0.0
    %1114 = vmatprep.subr.mxu0 0.0
    %1115 = vmatpush2.xpose.msra.mxu0 0.0
    %1116 = vmatprep.subr.mxu0 0.0
    %1117 = vmatpush2.xpose.msra.mxu0 0.0
    %1118 = vmatprep.subr.mxu0 0.0
    %1119 = vmatpush2.xpose.msra.mxu0 0.0
    %1120 = vmatprep.subr.mxu0 0.0
    %1121 = vmatpush2.xpose.msra.mxu0 0.0
    %1122 = vmatprep.subr.mxu0 0.0
    %1123 = vmatpush2.xpose.msra.mxu0 0.0
    %1124 = vmatprep.subr.mxu0 0.0
    %1125 = vmatpush2.xpose.msra.mxu0 0.0
    %1126 = vmatprep.subr.mxu0 0.0
    %1127 = vmatpush2.xpose.msra.mxu0 0.0
    %1128 = vmatprep.subr.mxu0 0.0
    %1129 = vmatpush2.xpose.msra.mxu0 0.0
    %1130 = vmatprep.subr.mxu0 0.0
    %1131 = vmatpush2.xpose.msra.mxu0 0.0
    %1132 = vmatprep.subr.mxu0 0.0
    %1133 = vmatpush2.xpose.msra.mxu0 0.0
    %1134 = vmatprep.subr.mxu0 0.0
    %1135 = vmatpush2.xpose.msra.mxu0 0.0
    %1136 = vmatprep.subr.mxu0 0.0
    %1137 = vmatpush2.xpose.msra.mxu0 0.0
    %1138 = vmatprep.subr.mxu0 0.0
    %1139 = vmatpush2.xpose.msra.mxu0 0.0
    %1140 = vmatprep.subr.mxu0 0.0
    %1141 = vmatpush2.xpose.msra.mxu0 0.0
    %1142 = vmatprep.mubr.f32.mxu0 0.0
    %1143 = vmatmul.mubr.f32.gmra.mxu0 %v1072
    %v1144 = vpop.f32.mrf.mxu0
    %v1145 = vadd.f32 0.0, %v1144
    %v1146 = vpop.f32.mrf.mxu0
    %1147 = vdwg.mxu0
    %1148 = vrot.lane.b32.xlu0 %v198, 112
    %v1149 = vpop.permute.xlu0 %1148
    %1150 = vrot.lane.b32.xlu0 %v294, 112
    %v1151 = vpop.permute.xlu0 %1150
    %1152 = vrot.lane.b32.xlu0 %v299, 112
    %v1153 = vpop.permute.xlu0 %1152
    %v1154 = vsel %vm390, %v1149, 0
    %v1156 = vsel %vm390, %v1151, 0
    %v1158 = vsel %vm390, %v1153, 0
    %1160 = vmatprep.subr.mxu0 0.0
    %1161 = vmatpush1.xpose.msra.mxu0 0.0
    %1162 = vmatprep.subr.mxu0 0.0
    %1163 = vmatpush1.xpose.msra.mxu0 0.0
    %1164 = vmatprep.subr.mxu0 0.0
    %1165 = vmatpush1.xpose.msra.mxu0 0.0
    %1166 = vmatprep.subr.mxu0 0.0
    %1167 = vmatpush1.xpose.msra.mxu0 0.0
    %1168 = vmatprep.subr.mxu0 0.0
    %1169 = vmatpush1.xpose.msra.mxu0 0.0
    %1170 = vmatprep.subr.mxu0 0.0
    %1171 = vmatpush1.xpose.msra.mxu0 0.0
    %1172 = vmatprep.subr.mxu0 0.0
    %1173 = vmatpush1.xpose.msra.mxu0 0.0
    %1174 = vmatprep.subr.mxu0 0.0
    %1175 = vmatpush1.xpose.msra.mxu0 0.0
    %1176 = vmatprep.subr.mxu0 0.0
    %1177 = vmatpush1.xpose.msra.mxu0 0.0
    %1178 = vmatprep.subr.mxu0 0.0
    %1179 = vmatpush1.xpose.msra.mxu0 0.0
    %1180 = vmatprep.subr.mxu0 0.0
    %1181 = vmatpush1.xpose.msra.mxu0 0.0
    %1182 = vmatprep.subr.mxu0 0.0
    %1183 = vmatpush1.xpose.msra.mxu0 0.0
    %1184 = vmatprep.subr.mxu0 0.0
    %1185 = vmatpush1.xpose.msra.mxu0 0.0
    %1186 = vmatprep.subr.mxu0 0.0
    %1187 = vmatpush1.xpose.msra.mxu0 0.0
    %1188 = vmatprep.subr.mxu0 0.0
    %1189 = vmatpush1.xpose.msra.mxu0 %v1158
    %1190 = vmatprep.subr.mxu0 0.0
    %1191 = vmatpush1.xpose.msra.mxu0 %v1156
    %1192 = vmatprep.subr.mxu0 0.0
    %1193 = vmatpush2.xpose.msra.mxu0 0.0
    %1194 = vmatprep.subr.mxu0 0.0
    %1195 = vmatpush2.xpose.msra.mxu0 0.0
    %1196 = vmatprep.subr.mxu0 0.0
    %1197 = vmatpush2.xpose.msra.mxu0 0.0
    %1198 = vmatprep.subr.mxu0 0.0
    %1199 = vmatpush2.xpose.msra.mxu0 0.0
    %1200 = vmatprep.subr.mxu0 0.0
    %1201 = vmatpush2.xpose.msra.mxu0 0.0
    %1202 = vmatprep.subr.mxu0 0.0
    %1203 = vmatpush2.xpose.msra.mxu0 0.0
    %1204 = vmatprep.subr.mxu0 0.0
    %1205 = vmatpush2.xpose.msra.mxu0 0.0
    %1206 = vmatprep.subr.mxu0 0.0
    %1207 = vmatpush2.xpose.msra.mxu0 0.0
    %1208 = vmatprep.subr.mxu0 0.0
    %1209 = vmatpush2.xpose.msra.mxu0 0.0
    %1210 = vmatprep.subr.mxu0 0.0
    %1211 = vmatpush2.xpose.msra.mxu0 0.0
    %1212 = vmatprep.subr.mxu0 0.0
    %1213 = vmatpush2.xpose.msra.mxu0 0.0
    %1214 = vmatprep.subr.mxu0 0.0
    %1215 = vmatpush2.xpose.msra.mxu0 0.0
    %1216 = vmatprep.subr.mxu0 0.0
    %1217 = vmatpush2.xpose.msra.mxu0 0.0
    %1218 = vmatprep.subr.mxu0 0.0
    %1219 = vmatpush2.xpose.msra.mxu0 0.0
    %1220 = vmatprep.subr.mxu0 0.0
    %1221 = vmatpush2.xpose.msra.mxu0 0.0
    %1222 = vmatprep.subr.mxu0 0.0
    %1223 = vmatpush2.xpose.msra.mxu0 0.0
    %1224 = vmatprep.mubr.f32.mxu0 0.0
    %1225 = vmatmul.mubr.f32.gmra.mxu0 %v1154
    %v1226 = vpop.f32.mrf.mxu0
    %v1227 = vadd.f32 0.0, %v1226
    %v1228 = vpop.f32.mrf.mxu0
    %1229 = vdwg.mxu0
    %v1230 = vsel %vm549, %v1145, -inf
    %1231 = vmax.xlane.f32.xlu0 %v1230
    %v1232 = vpop.xlane.xlu0 %1231
    %v1233 = vsel %vm549, %v1227, -inf
    %1234 = vmax.xlane.f32.xlu0 %v1233
    %v1235 = vpop.xlane.xlu0 %1234
    %v1236 = vsub.f32 %v1145, %v1232
    %v1237 = vsub.f32 %v1227, %v1235
    %v1238 = vmul.f32 %v1236, 1.442695
    %v1239 = vpow.pop %v1238
    %v1240 = vmul.f32 %v1237, 1.442695
    %v1241 = vpow.pop %v1240
    %v1242 = vsel %vm549, %v1239, 0.0
    %1243 = vadd.xlane.f32.xlu0 %v1242
    %v1244 = vpop.xlane.xlu0 %1243
    %v1245 = vsel %vm549, %v1241, 0.0
    %1246 = vadd.xlane.f32.xlu0 %v1245
    %v1247 = vpop.xlane.xlu0 %1246
    %v1248 = vrcp.pop %v1244
    %v1249 = vrcp.pop %v1247
    %v1250 = vmul.f32 %v1239, %v1248
    %v1251 = vmul.f32 %v1241, %v1249
    %1252 = vrot.lane.b32.xlu0 %v372, 112
    %v1253 = vpop.permute.xlu0 %1252
    %1254 = vrot.lane.b32.xlu0 %v377, 112
    %v1255 = vpop.permute.xlu0 %1254
    %v1259 = vsel %vm549, %v1250, 0
    %1261 = vmatprep.subr.mxu0 0.0
    %1262 = vmatpush1.msra.mxu0 0.0
    %1263 = vmatprep.subr.mxu0 0.0
    %1264 = vmatpush1.msra.mxu0 0.0
    %1265 = vmatprep.subr.mxu0 0.0
    %1266 = vmatpush1.msra.mxu0 0.0
    %1267 = vmatprep.subr.mxu0 0.0
    %1268 = vmatpush1.msra.mxu0 0.0
    %1269 = vmatprep.subr.mxu0 0.0
    %1270 = vmatpush1.msra.mxu0 0.0
    %1271 = vmatprep.subr.mxu0 0.0
    %1272 = vmatpush1.msra.mxu0 0.0
    %1273 = vmatprep.subr.mxu0 0.0
    %1274 = vmatpush1.msra.mxu0 0.0
    %1275 = vmatprep.subr.mxu0 0.0
    %1276 = vmatpush1.msra.mxu0 0.0
    %1277 = vmatprep.subr.mxu0 0.0
    %1278 = vmatpush1.msra.mxu0 0.0
    %1279 = vmatprep.subr.mxu0 0.0
    %1280 = vmatpush1.msra.mxu0 0.0
    %1281 = vmatprep.subr.mxu0 0.0
    %1282 = vmatpush1.msra.mxu0 0.0
    %1283 = vmatprep.subr.mxu0 0.0
    %1284 = vmatpush1.msra.mxu0 0.0
    %1285 = vmatprep.subr.mxu0 0.0
    %1286 = vmatpush1.msra.mxu0 0.0
    %1287 = vmatprep.subr.mxu0 0.0
    %1288 = vmatpush1.msra.mxu0 0.0
    %1289 = vmatprep.subr.mxu0 0.0
    %1290 = vmatpush1.msra.mxu0 %v1255
    %1291 = vmatprep.subr.mxu0 0.0
    %1292 = vmatpush1.msra.mxu0 %v1253
    %1293 = vmatprep.subr.mxu0 0.0
    %1294 = vmatpush2.msra.mxu0 0.0
    %1295 = vmatprep.subr.mxu0 0.0
    %1296 = vmatpush2.msra.mxu0 0.0
    %1297 = vmatprep.subr.mxu0 0.0
    %1298 = vmatpush2.msra.mxu0 0.0
    %1299 = vmatprep.subr.mxu0 0.0
    %1300 = vmatpush2.msra.mxu0 0.0
    %1301 = vmatprep.subr.mxu0 0.0
    %1302 = vmatpush2.msra.mxu0 0.0
    %1303 = vmatprep.subr.mxu0 0.0
    %1304 = vmatpush2.msra.mxu0 0.0
    %1305 = vmatprep.subr.mxu0 0.0
    %1306 = vmatpush2.msra.mxu0 0.0
    %1307 = vmatprep.subr.mxu0 0.0
    %1308 = vmatpush2.msra.mxu0 0.0
    %1309 = vmatprep.subr.mxu0 0.0
    %1310 = vmatpush2.msra.mxu0 0.0
    %1311 = vmatprep.subr.mxu0 0.0
    %1312 = vmatpush2.msra.mxu0 0.0
    %1313 = vmatprep.subr.mxu0 0.0
    %1314 = vmatpush2.msra.mxu0 0.0
    %1315 = vmatprep.subr.mxu0 0.0
    %1316 = vmatpush2.msra.mxu0 0.0
    %1317 = vmatprep.subr.mxu0 0.0
    %1318 = vmatpush2.msra.mxu0 0.0
    %1319 = vmatprep.subr.mxu0 0.0
    %1320 = vmatpush2.msra.mxu0 0.0
    %1321 = vmatprep.subr.mxu0 0.0
    %1322 = vmatpush2.msra.mxu0 0.0
    %1323 = vmatprep.subr.mxu0 0.0
    %1324 = vmatpush2.msra.mxu0 0.0
    %1325 = vmatprep.mubr.f32.mxu0 0.0
    %1326 = vmatmul.mubr.f32.gmra.mxu0 %v1259
    %v1327 = vpop.f32.mrf.mxu0
    %v1328 = vadd.f32 0.0, %v1327
    %v1329 = vpop.f32.mrf.mxu0
    %1330 = vdwg.mxu0
    %1331 = vrot.lane.b32.xlu0 %v382, 112
    %v1332 = vpop.permute.xlu0 %1331
    %1333 = vrot.lane.b32.xlu0 %v387, 112
    %v1334 = vpop.permute.xlu0 %1333
    %v1338 = vsel %vm549, %v1251, 0
    %1340 = vmatprep.subr.mxu0 0.0
    %1341 = vmatpush1.msra.mxu0 0.0
    %1342 = vmatprep.subr.mxu0 0.0
    %1343 = vmatpush1.msra.mxu0 0.0
    %1344 = vmatprep.subr.mxu0 0.0
    %1345 = vmatpush1.msra.mxu0 0.0
    %1346 = vmatprep.subr.mxu0 0.0
    %1347 = vmatpush1.msra.mxu0 0.0
    %1348 = vmatprep.subr.mxu0 0.0
    %1349 = vmatpush1.msra.mxu0 0.0
    %1350 = vmatprep.subr.mxu0 0.0
    %1351 = vmatpush1.msra.mxu0 0.0
    %1352 = vmatprep.subr.mxu0 0.0
    %1353 = vmatpush1.msra.mxu0 0.0
    %1354 = vmatprep.subr.mxu0 0.0
    %1355 = vmatpush1.msra.mxu0 0.0
    %1356 = vmatprep.subr.mxu0 0.0
    %1357 = vmatpush1.msra.mxu0 0.0
    %1358 = vmatprep.subr.mxu0 0.0
    %1359 = vmatpush1.msra.mxu0 0.0
    %1360 = vmatprep.subr.mxu0 0.0
    %1361 = vmatpush1.msra.mxu0 0.0
    %1362 = vmatprep.subr.mxu0 0.0
    %1363 = vmatpush1.msra.mxu0 0.0
    %1364 = vmatprep.subr.mxu0 0.0
    %1365 = vmatpush1.msra.mxu0 0.0
    %1366 = vmatprep.subr.mxu0 0.0
    %1367 = vmatpush1.msra.mxu0 0.0
    %1368 = vmatprep.subr.mxu0 0.0
    %1369 = vmatpush1.msra.mxu0 %v1334
    %1370 = vmatprep.subr.mxu0 0.0
    %1371 = vmatpush1.msra.mxu0 %v1332
    %1372 = vmatprep.subr.mxu0 0.0
    %1373 = vmatpush2.msra.mxu0 0.0
    %1374 = vmatprep.subr.mxu0 0.0
    %1375 = vmatpush2.msra.mxu0 0.0
    %1376 = vmatprep.subr.mxu0 0.0
    %1377 = vmatpush2.msra.mxu0 0.0
    %1378 = vmatprep.subr.mxu0 0.0
    %1379 = vmatpush2.msra.mxu0 0.0
    %1380 = vmatprep.subr.mxu0 0.0
    %1381 = vmatpush2.msra.mxu0 0.0
    %1382 = vmatprep.subr.mxu0 0.0
    %1383 = vmatpush2.msra.mxu0 0.0
    %1384 = vmatprep.subr.mxu0 0.0
    %1385 = vmatpush2.msra.mxu0 0.0
    %1386 = vmatprep.subr.mxu0 0.0
    %1387 = vmatpush2.msra.mxu0 0.0
    %1388 = vmatprep.subr.mxu0 0.0
    %1389 = vmatpush2.msra.mxu0 0.0
    %1390 = vmatprep.subr.mxu0 0.0
    %1391 = vmatpush2.msra.mxu0 0.0
    %1392 = vmatprep.subr.mxu0 0.0
    %1393 = vmatpush2.msra.mxu0 0.0
    %1394 = vmatprep.subr.mxu0 0.0
    %1395 = vmatpush2.msra.mxu0 0.0
    %1396 = vmatprep.subr.mxu0 0.0
    %1397 = vmatpush2.msra.mxu0 0.0
    %1398 = vmatprep.subr.mxu0 0.0
    %1399 = vmatpush2.msra.mxu0 0.0
    %1400 = vmatprep.subr.mxu0 0.0
    %1401 = vmatpush2.msra.mxu0 0.0
    %1402 = vmatprep.subr.mxu0 0.0
    %1403 = vmatpush2.msra.mxu0 0.0
    %1404 = vmatprep.mubr.f32.mxu0 0.0
    %1405 = vmatmul.mubr.f32.gmra.mxu0 %v1338
    %v1406 = vpop.f32.mrf.mxu0
    %v1407 = vadd.f32 0.0, %v1406
    %v1408 = vpop.f32.mrf.mxu0
    %1409 = vdwg.mxu0
    %1410 = vrot.lane.b32.xlu0 %v193, 104
    %v1411 = vpop.permute.xlu0 %1410
    %1412 = vrot.lane.b32.xlu0 %v284, 104
    %v1413 = vpop.permute.xlu0 %1412
    %1414 = vrot.lane.b32.xlu0 %v289, 104
    %v1415 = vpop.permute.xlu0 %1414
    %v1416 = vsel %vm390, %v1411, 0
    %v1418 = vsel %vm390, %v1413, 0
    %v1420 = vsel %vm390, %v1415, 0
    %1422 = vmatprep.subr.mxu0 0.0
    %1423 = vmatpush1.xpose.msra.mxu0 0.0
    %1424 = vmatprep.subr.mxu0 0.0
    %1425 = vmatpush1.xpose.msra.mxu0 0.0
    %1426 = vmatprep.subr.mxu0 0.0
    %1427 = vmatpush1.xpose.msra.mxu0 0.0
    %1428 = vmatprep.subr.mxu0 0.0
    %1429 = vmatpush1.xpose.msra.mxu0 0.0
    %1430 = vmatprep.subr.mxu0 0.0
    %1431 = vmatpush1.xpose.msra.mxu0 0.0
    %1432 = vmatprep.subr.mxu0 0.0
    %1433 = vmatpush1.xpose.msra.mxu0 0.0
    %1434 = vmatprep.subr.mxu0 0.0
    %1435 = vmatpush1.xpose.msra.mxu0 0.0
    %1436 = vmatprep.subr.mxu0 0.0
    %1437 = vmatpush1.xpose.msra.mxu0 0.0
    %1438 = vmatprep.subr.mxu0 0.0
    %1439 = vmatpush1.xpose.msra.mxu0 0.0
    %1440 = vmatprep.subr.mxu0 0.0
    %1441 = vmatpush1.xpose.msra.mxu0 0.0
    %1442 = vmatprep.subr.mxu0 0.0
    %1443 = vmatpush1.xpose.msra.mxu0 0.0
    %1444 = vmatprep.subr.mxu0 0.0
    %1445 = vmatpush1.xpose.msra.mxu0 0.0
    %1446 = vmatprep.subr.mxu0 0.0
    %1447 = vmatpush1.xpose.msra.mxu0 0.0
    %1448 = vmatprep.subr.mxu0 0.0
    %1449 = vmatpush1.xpose.msra.mxu0 0.0
    %1450 = vmatprep.subr.mxu0 0.0
    %1451 = vmatpush1.xpose.msra.mxu0 %v1420
    %1452 = vmatprep.subr.mxu0 0.0
    %1453 = vmatpush1.xpose.msra.mxu0 %v1418
    %1454 = vmatprep.subr.mxu0 0.0
    %1455 = vmatpush2.xpose.msra.mxu0 0.0
    %1456 = vmatprep.subr.mxu0 0.0
    %1457 = vmatpush2.xpose.msra.mxu0 0.0
    %1458 = vmatprep.subr.mxu0 0.0
    %1459 = vmatpush2.xpose.msra.mxu0 0.0
    %1460 = vmatprep.subr.mxu0 0.0
    %1461 = vmatpush2.xpose.msra.mxu0 0.0
    %1462 = vmatprep.subr.mxu0 0.0
    %1463 = vmatpush2.xpose.msra.mxu0 0.0
    %1464 = vmatprep.subr.mxu0 0.0
    %1465 = vmatpush2.xpose.msra.mxu0 0.0
    %1466 = vmatprep.subr.mxu0 0.0
    %1467 = vmatpush2.xpose.msra.mxu0 0.0
    %1468 = vmatprep.subr.mxu0 0.0
    %1469 = vmatpush2.xpose.msra.mxu0 0.0
    %1470 = vmatprep.subr.mxu0 0.0
    %1471 = vmatpush2.xpose.msra.mxu0 0.0
    %1472 = vmatprep.subr.mxu0 0.0
    %1473 = vmatpush2.xpose.msra.mxu0 0.0
    %1474 = vmatprep.subr.mxu0 0.0
    %1475 = vmatpush2.xpose.msra.mxu0 0.0
    %1476 = vmatprep.subr.mxu0 0.0
    %1477 = vmatpush2.xpose.msra.mxu0 0.0
    %1478 = vmatprep.subr.mxu0 0.0
    %1479 = vmatpush2.xpose.msra.mxu0 0.0
    %1480 = vmatprep.subr.mxu0 0.0
    %1481 = vmatpush2.xpose.msra.mxu0 0.0
    %1482 = vmatprep.subr.mxu0 0.0
    %1483 = vmatpush2.xpose.msra.mxu0 0.0
    %1484 = vmatprep.subr.mxu0 0.0
    %1485 = vmatpush2.xpose.msra.mxu0 0.0
    %1486 = vmatprep.mubr.f32.mxu0 0.0
    %1487 = vmatmul.mubr.f32.gmra.mxu0 %v1416
    %v1488 = vpop.f32.mrf.mxu0
    %v1489 = vadd.f32 0.0, %v1488
    %v1490 = vpop.f32.mrf.mxu0
    %1491 = vdwg.mxu0
    %1492 = vrot.lane.b32.xlu0 %v198, 104
    %v1493 = vpop.permute.xlu0 %1492
    %1494 = vrot.lane.b32.xlu0 %v294, 104
    %v1495 = vpop.permute.xlu0 %1494
    %1496 = vrot.lane.b32.xlu0 %v299, 104
    %v1497 = vpop.permute.xlu0 %1496
    %v1498 = vsel %vm390, %v1493, 0
    %v1500 = vsel %vm390, %v1495, 0
    %v1502 = vsel %vm390, %v1497, 0
    %1504 = vmatprep.subr.mxu0 0.0
    %1505 = vmatpush1.xpose.msra.mxu0 0.0
    %1506 = vmatprep.subr.mxu0 0.0
    %1507 = vmatpush1.xpose.msra.mxu0 0.0
    %1508 = vmatprep.subr.mxu0 0.0
    %1509 = vmatpush1.xpose.msra.mxu0 0.0
    %1510 = vmatprep.subr.mxu0 0.0
    %1511 = vmatpush1.xpose.msra.mxu0 0.0
    %1512 = vmatprep.subr.mxu0 0.0
    %1513 = vmatpush1.xpose.msra.mxu0 0.0
    %1514 = vmatprep.subr.mxu0 0.0
    %1515 = vmatpush1.xpose.msra.mxu0 0.0
    %1516 = vmatprep.subr.mxu0 0.0
    %1517 = vmatpush1.xpose.msra.mxu0 0.0
    %1518 = vmatprep.subr.mxu0 0.0
    %1519 = vmatpush1.xpose.msra.mxu0 0.0
    %1520 = vmatprep.subr.mxu0 0.0
    %1521 = vmatpush1.xpose.msra.mxu0 0.0
    %1522 = vmatprep.subr.mxu0 0.0
    %1523 = vmatpush1.xpose.msra.mxu0 0.0
    %1524 = vmatprep.subr.mxu0 0.0
    %1525 = vmatpush1.xpose.msra.mxu0 0.0
    %1526 = vmatprep.subr.mxu0 0.0
    %1527 = vmatpush1.xpose.msra.mxu0 0.0
    %1528 = vmatprep.subr.mxu0 0.0
    %1529 = vmatpush1.xpose.msra.mxu0 0.0
    %1530 = vmatprep.subr.mxu0 0.0
    %1531 = vmatpush1.xpose.msra.mxu0 0.0
    %1532 = vmatprep.subr.mxu0 0.0
    %1533 = vmatpush1.xpose.msra.mxu0 %v1502
    %1534 = vmatprep.subr.mxu0 0.0
    %1535 = vmatpush1.xpose.msra.mxu0 %v1500
    %1536 = vmatprep.subr.mxu0 0.0
    %1537 = vmatpush2.xpose.msra.mxu0 0.0
    %1538 = vmatprep.subr.mxu0 0.0
    %1539 = vmatpush2.xpose.msra.mxu0 0.0
    %1540 = vmatprep.subr.mxu0 0.0
    %1541 = vmatpush2.xpose.msra.mxu0 0.0
    %1542 = vmatprep.subr.mxu0 0.0
    %1543 = vmatpush2.xpose.msra.mxu0 0.0
    %1544 = vmatprep.subr.mxu0 0.0
    %1545 = vmatpush2.xpose.msra.mxu0 0.0
    %1546 = vmatprep.subr.mxu0 0.0
    %1547 = vmatpush2.xpose.msra.mxu0 0.0
    %1548 = vmatprep.subr.mxu0 0.0
    %1549 = vmatpush2.xpose.msra.mxu0 0.0
    %1550 = vmatprep.subr.mxu0 0.0
    %1551 = vmatpush2.xpose.msra.mxu0 0.0
    %1552 = vmatprep.subr.mxu0 0.0
    %1553 = vmatpush2.xpose.msra.mxu0 0.0
    %1554 = vmatprep.subr.mxu0 0.0
    %1555 = vmatpush2.xpose.msra.mxu0 0.0
    %1556 = vmatprep.subr.mxu0 0.0
    %1557 = vmatpush2.xpose.msra.mxu0 0.0
    %1558 = vmatprep.subr.mxu0 0.0
    %1559 = vmatpush2.xpose.msra.mxu0 0.0
    %1560 = vmatprep.subr.mxu0 0.0
    %1561 = vmatpush2.xpose.msra.mxu0 0.0
    %1562 = vmatprep.subr.mxu0 0.0
    %1563 = vmatpush2.xpose.msra.mxu0 0.0
    %1564 = vmatprep.subr.mxu0 0.0
    %1565 = vmatpush2.xpose.msra.mxu0 0.0
    %1566 = vmatprep.subr.mxu0 0.0
    %1567 = vmatpush2.xpose.msra.mxu0 0.0
    %1568 = vmatprep.mubr.f32.mxu0 0.0
    %1569 = vmatmul.mubr.f32.gmra.mxu0 %v1498
    %v1570 = vpop.f32.mrf.mxu0
    %v1571 = vadd.f32 0.0, %v1570
    %v1572 = vpop.f32.mrf.mxu0
    %1573 = vdwg.mxu0
    %v1574 = vsel %vm549, %v1489, -inf
    %1575 = vmax.xlane.f32.xlu0 %v1574
    %v1576 = vpop.xlane.xlu0 %1575
    %v1577 = vsel %vm549, %v1571, -inf
    %1578 = vmax.xlane.f32.xlu0 %v1577
    %v1579 = vpop.xlane.xlu0 %1578
    %v1580 = vsub.f32 %v1489, %v1576
    %v1581 = vsub.f32 %v1571, %v1579
    %v1582 = vmul.f32 %v1580, 1.442695
    %v1583 = vpow.pop %v1582
    %v1584 = vmul.f32 %v1581, 1.442695
    %v1585 = vpow.pop %v1584
    %v1586 = vsel %vm549, %v1583, 0.0
    %1587 = vadd.xlane.f32.xlu0 %v1586
    %v1588 = vpop.xlane.xlu0 %1587
    %v1589 = vsel %vm549, %v1585, 0.0
    %1590 = vadd.xlane.f32.xlu0 %v1589
    %v1591 = vpop.xlane.xlu0 %1590
    %v1592 = vrcp.pop %v1588
    %v1593 = vrcp.pop %v1591
    %v1594 = vmul.f32 %v1583, %v1592
    %v1595 = vmul.f32 %v1585, %v1593
    %1596 = vrot.lane.b32.xlu0 %v372, 104
    %v1597 = vpop.permute.xlu0 %1596
    %1598 = vrot.lane.b32.xlu0 %v377, 104
    %v1599 = vpop.permute.xlu0 %1598
    %v1603 = vsel %vm549, %v1594, 0
    %1605 = vmatprep.subr.mxu0 0.0
    %1606 = vmatpush1.msra.mxu0 0.0
    %1607 = vmatprep.subr.mxu0 0.0
    %1608 = vmatpush1.msra.mxu0 0.0
    %1609 = vmatprep.subr.mxu0 0.0
    %1610 = vmatpush1.msra.mxu0 0.0
    %1611 = vmatprep.subr.mxu0 0.0
    %1612 = vmatpush1.msra.mxu0 0.0
    %1613 = vmatprep.subr.mxu0 0.0
    %1614 = vmatpush1.msra.mxu0 0.0
    %1615 = vmatprep.subr.mxu0 0.0
    %1616 = vmatpush1.msra.mxu0 0.0
    %1617 = vmatprep.subr.mxu0 0.0
    %1618 = vmatpush1.msra.mxu0 0.0
    %1619 = vmatprep.subr.mxu0 0.0
    %1620 = vmatpush1.msra.mxu0 0.0
    %1621 = vmatprep.subr.mxu0 0.0
    %1622 = vmatpush1.msra.mxu0 0.0
    %1623 = vmatprep.subr.mxu0 0.0
    %1624 = vmatpush1.msra.mxu0 0.0
    %1625 = vmatprep.subr.mxu0 0.0
    %1626 = vmatpush1.msra.mxu0 0.0
    %1627 = vmatprep.subr.mxu0 0.0
    %1628 = vmatpush1.msra.mxu0 0.0
    %1629 = vmatprep.subr.mxu0 0.0
    %1630 = vmatpush1.msra.mxu0 0.0
    %1631 = vmatprep.subr.mxu0 0.0
    %1632 = vmatpush1.msra.mxu0 0.0
    %1633 = vmatprep.subr.mxu0 0.0
    %1634 = vmatpush1.msra.mxu0 %v1599
    %1635 = vmatprep.subr.mxu0 0.0
    %1636 = vmatpush1.msra.mxu0 %v1597
    %1637 = vmatprep.subr.mxu0 0.0
    %1638 = vmatpush2.msra.mxu0 0.0
    %1639 = vmatprep.subr.mxu0 0.0
    %1640 = vmatpush2.msra.mxu0 0.0
    %1641 = vmatprep.subr.mxu0 0.0
    %1642 = vmatpush2.msra.mxu0 0.0
    %1643 = vmatprep.subr.mxu0 0.0
    %1644 = vmatpush2.msra.mxu0 0.0
    %1645 = vmatprep.subr.mxu0 0.0
    %1646 = vmatpush2.msra.mxu0 0.0
    %1647 = vmatprep.subr.mxu0 0.0
    %1648 = vmatpush2.msra.mxu0 0.0
    %1649 = vmatprep.subr.mxu0 0.0
    %1650 = vmatpush2.msra.mxu0 0.0
    %1651 = vmatprep.subr.mxu0 0.0
    %1652 = vmatpush2.msra.mxu0 0.0
    %1653 = vmatprep.subr.mxu0 0.0
    %1654 = vmatpush2.msra.mxu0 0.0
    %1655 = vmatprep.subr.mxu0 0.0
    %1656 = vmatpush2.msra.mxu0 0.0
    %1657 = vmatprep.subr.mxu0 0.0
    %1658 = vmatpush2.msra.mxu0 0.0
    %1659 = vmatprep.subr.mxu0 0.0
    %1660 = vmatpush2.msra.mxu0 0.0
    %1661 = vmatprep.subr.mxu0 0.0
    %1662 = vmatpush2.msra.mxu0 0.0
    %1663 = vmatprep.subr.mxu0 0.0
    %1664 = vmatpush2.msra.mxu0 0.0
    %1665 = vmatprep.subr.mxu0 0.0
    %1666 = vmatpush2.msra.mxu0 0.0
    %1667 = vmatprep.subr.mxu0 0.0
    %1668 = vmatpush2.msra.mxu0 0.0
    %1669 = vmatprep.mubr.f32.mxu0 0.0
    %1670 = vmatmul.mubr.f32.gmra.mxu0 %v1603
    %v1671 = vpop.f32.mrf.mxu0
    %v1672 = vadd.f32 0.0, %v1671
    %v1673 = vpop.f32.mrf.mxu0
    %1674 = vdwg.mxu0
    %1675 = vrot.lane.b32.xlu0 %v382, 104
    %v1676 = vpop.permute.xlu0 %1675
    %1677 = vrot.lane.b32.xlu0 %v387, 104
    %v1678 = vpop.permute.xlu0 %1677
    %v1682 = vsel %vm549, %v1595, 0
    %1684 = vmatprep.subr.mxu0 0.0
    %1685 = vmatpush1.msra.mxu0 0.0
    %1686 = vmatprep.subr.mxu0 0.0
    %1687 = vmatpush1.msra.mxu0 0.0
    %1688 = vmatprep.subr.mxu0 0.0
    %1689 = vmatpush1.msra.mxu0 0.0
    %1690 = vmatprep.subr.mxu0 0.0
    %1691 = vmatpush1.msra.mxu0 0.0
    %1692 = vmatprep.subr.mxu0 0.0
    %1693 = vmatpush1.msra.mxu0 0.0
    %1694 = vmatprep.subr.mxu0 0.0
    %1695 = vmatpush1.msra.mxu0 0.0
    %1696 = vmatprep.subr.mxu0 0.0
    %1697 = vmatpush1.msra.mxu0 0.0
    %1698 = vmatprep.subr.mxu0 0.0
    %1699 = vmatpush1.msra.mxu0 0.0
    %1700 = vmatprep.subr.mxu0 0.0
    %1701 = vmatpush1.msra.mxu0 0.0
    %1702 = vmatprep.subr.mxu0 0.0
    %1703 = vmatpush1.msra.mxu0 0.0
    %1704 = vmatprep.subr.mxu0 0.0
    %1705 = vmatpush1.msra.mxu0 0.0
    %1706 = vmatprep.subr.mxu0 0.0
    %1707 = vmatpush1.msra.mxu0 0.0
    %1708 = vmatprep.subr.mxu0 0.0
    %1709 = vmatpush1.msra.mxu0 0.0
    %1710 = vmatprep.subr.mxu0 0.0
    %1711 = vmatpush1.msra.mxu0 0.0
    %1712 = vmatprep.subr.mxu0 0.0
    %1713 = vmatpush1.msra.mxu0 %v1678
    %1714 = vmatprep.subr.mxu0 0.0
    %1715 = vmatpush1.msra.mxu0 %v1676
    %1716 = vmatprep.subr.mxu0 0.0
    %1717 = vmatpush2.msra.mxu0 0.0
    %1718 = vmatprep.subr.mxu0 0.0
    %1719 = vmatpush2.msra.mxu0 0.0
    %1720 = vmatprep.subr.mxu0 0.0
    %1721 = vmatpush2.msra.mxu0 0.0
    %1722 = vmatprep.subr.mxu0 0.0
    %1723 = vmatpush2.msra.mxu0 0.0
    %1724 = vmatprep.subr.mxu0 0.0
    %1725 = vmatpush2.msra.mxu0 0.0
    %1726 = vmatprep.subr.mxu0 0.0
    %1727 = vmatpush2.msra.mxu0 0.0
    %1728 = vmatprep.subr.mxu0 0.0
    %1729 = vmatpush2.msra.mxu0 0.0
    %1730 = vmatprep.subr.mxu0 0.0
    %1731 = vmatpush2.msra.mxu0 0.0
    %1732 = vmatprep.subr.mxu0 0.0
    %1733 = vmatpush2.msra.mxu0 0.0
    %1734 = vmatprep.subr.mxu0 0.0
    %1735 = vmatpush2.msra.mxu0 0.0
    %1736 = vmatprep.subr.mxu0 0.0
    %1737 = vmatpush2.msra.mxu0 0.0
    %1738 = vmatprep.subr.mxu0 0.0
    %1739 = vmatpush2.msra.mxu0 0.0
    %1740 = vmatprep.subr.mxu0 0.0
    %1741 = vmatpush2.msra.mxu0 0.0
    %1742 = vmatprep.subr.mxu0 0.0
    %1743 = vmatpush2.msra.mxu0 0.0
    %1744 = vmatprep.subr.mxu0 0.0
    %1745 = vmatpush2.msra.mxu0 0.0
    %1746 = vmatprep.subr.mxu0 0.0
    %1747 = vmatpush2.msra.mxu0 0.0
    %1748 = vmatprep.mubr.f32.mxu0 0.0
    %1749 = vmatmul.mubr.f32.gmra.mxu0 %v1682
    %v1750 = vpop.f32.mrf.mxu0
    %v1751 = vadd.f32 0.0, %v1750
    %v1752 = vpop.f32.mrf.mxu0
    %1753 = vdwg.mxu0
    %1756 = vrot.lane.b32.xlu0 %v982, 8
    %v1757 = vpop.permute.xlu0 %1756
    %1758 = vrot.lane.b32.xlu0 %v1063, 8
    %v1759 = vpop.permute.xlu0 %1758
    %1764 = vrot.lane.b32.xlu0 %v1328, 16
    %v1765 = vpop.permute.xlu0 %1764
    %1766 = vrot.lane.b32.xlu0 %v1407, 16
    %v1767 = vpop.permute.xlu0 %1766
    %1772 = vrot.lane.b32.xlu0 %v1672, 24
    %v1773 = vpop.permute.xlu0 %1772
    %1774 = vrot.lane.b32.xlu0 %v1751, 24
    %v1775 = vpop.permute.xlu0 %1774
    %v1778 = vsel %vm390, %v642, %v1757
    %v1779 = vsel %vm390, %v715, %v1759
    %v1780 = vsel %vm549, %v1778, %v1765
    %v1781 = vsel %vm549, %v1779, %v1767
    %v1782 = vsel %vm204, %v1780, %v1773
    %v1783 = vsel %vm204, %v1781, %v1775
    %v1784 = vld [vmem:[%s6] sm:$0xff]
    %v1785 = vadd.f32 %v1782, %v1784
    %v1786 = vadd.f32 %v1783, %v1784
    %v1787 = vld [vmem:[#allocation11] sm:$0xff]
    %v1788 = vld [vmem:[#allocation11 + $0x8] sm:$0xff]
    %v1789 = vld [vmem:[#allocation11 + $0x10] sm:$0xff]
    %v1790 = vld [vmem:[#allocation11 + $0x18] sm:$0xff]
    %v1792 = vsel %vm119, %v1785, 0
    %v1795 = vsel %vm119, %v1786, 0
    %1797 = vmatprep.subr.mxu0 0.0
    %1798 = vmatpush1.msra.mxu0 0.0
    %1799 = vmatprep.subr.mxu0 0.0
    %1800 = vmatpush1.msra.mxu0 0.0
    %1801 = vmatprep.subr.mxu0 0.0
    %1802 = vmatpush1.msra.mxu0 0.0
    %1803 = vmatprep.subr.mxu0 0.0
    %1804 = vmatpush1.msra.mxu0 0.0
    %1805 = vmatprep.subr.mxu0 0.0
    %1806 = vmatpush1.msra.mxu0 0.0
    %1807 = vmatprep.subr.mxu0 0.0
    %1808 = vmatpush1.msra.mxu0 0.0
    %1809 = vmatprep.subr.mxu0 0.0
    %1810 = vmatpush1.msra.mxu0 0.0
    %1811 = vmatprep.subr.mxu0 0.0
    %1812 = vmatpush1.msra.mxu0 0.0
    %1813 = vmatprep.subr.mxu0 0.0
    %1814 = vmatpush1.msra.mxu0 0.0
    %1815 = vmatprep.subr.mxu0 0.0
    %1816 = vmatpush1.msra.mxu0 0.0
    %1817 = vmatprep.subr.mxu0 0.0
    %1818 = vmatpush1.msra.mxu0 0.0
    %1819 = vmatprep.subr.mxu0 0.0
    %1820 = vmatpush1.msra.mxu0 0.0
    %1821 = vmatprep.subr.mxu0 0.0
    %1822 = vmatpush1.msra.mxu0 %v1790
    %1823 = vmatprep.subr.mxu0 0.0
    %1824 = vmatpush1.msra.mxu0 %v1789
    %1825 = vmatprep.subr.mxu0 0.0
    %1826 = vmatpush1.msra.mxu0 %v1788
    %1827 = vmatprep.subr.mxu0 0.0
    %1828 = vmatpush1.msra.mxu0 %v1787
    %1829 = vmatprep.subr.mxu0 0.0
    %1830 = vmatpush2.msra.mxu0 0.0
    %1831 = vmatprep.subr.mxu0 0.0
    %1832 = vmatpush2.msra.mxu0 0.0
    %1833 = vmatprep.subr.mxu0 0.0
    %1834 = vmatpush2.msra.mxu0 0.0
    %1835 = vmatprep.subr.mxu0 0.0
    %1836 = vmatpush2.msra.mxu0 0.0
    %1837 = vmatprep.subr.mxu0 0.0
    %1838 = vmatpush2.msra.mxu0 0.0
    %1839 = vmatprep.subr.mxu0 0.0
    %1840 = vmatpush2.msra.mxu0 0.0
    %1841 = vmatprep.subr.mxu0 0.0
    %1842 = vmatpush2.msra.mxu0 0.0
    %1843 = vmatprep.subr.mxu0 0.0
    %1844 = vmatpush2.msra.mxu0 0.0
    %1845 = vmatprep.subr.mxu0 0.0
    %1846 = vmatpush2.msra.mxu0 0.0
    %1847 = vmatprep.subr.mxu0 0.0
    %1848 = vmatpush2.msra.mxu0 0.0
    %1849 = vmatprep.subr.mxu0 0.0
    %1850 = vmatpush2.msra.mxu0 0.0
    %1851 = vmatprep.subr.mxu0 0.0
    %1852 = vmatpush2.msra.mxu0 0.0
    %1853 = vmatprep.subr.mxu0 0.0
    %1854 = vmatpush2.msra.mxu0 0.0
    %1855 = vmatprep.subr.mxu0 0.0
    %1856 = vmatpush2.msra.mxu0 0.0
    %1857 = vmatprep.subr.mxu0 0.0
    %1858 = vmatpush2.msra.mxu0 0.0
    %1859 = vmatprep.subr.mxu0 0.0
    %1860 = vmatpush2.msra.mxu0 0.0
    %1861 = vmatprep.mubr.f32.mxu0 0.0
    %1862 = vmatmul.mubr.f32.gmra.mxu0 %v1792
    %v1863 = vpop.f32.mrf.mxu0
    %v1864 = vadd.f32 0.0, %v1863
    %v1865 = vpop.f32.mrf.mxu0
    %1866 = vmatprep.mubr.f32.mxu0 0.0
    %1867 = vmatmul.mubr.f32.gmra.mxu0 %v1795
    %v1868 = vpop.f32.mrf.mxu0
    %v1869 = vadd.f32 0.0, %v1868
    %v1870 = vpop.f32.mrf.mxu0
    %1871 = vdwg.mxu0
    %1872 = vst.msk [vmem:[#allocation13] sm:$0xff] %vm119, %v1864
    %1873 = vst.msk [vmem:[#allocation13 + $0x8] sm:$0xff] %vm119, %v1869
    // Predicated region
    $region54: #{tpu_custom_call.1} parent=1 // pred_check
      _
    $region55: #{tpu_custom_call.1} parent=1 // pred_check_branch
      %1875 = sbr.rel (0) target = $region57
    $region56: #{tpu_custom_call.1} parent=1 // pred_region
      %s1877 = ssub.s32 256, 256
      %1878 = vsyncadd [#allocation4], %s1877
      %s1879 = sshll.u32 [#allocation13], 4
      %s1880 = int_to_ptr.vmem [resolvable:$true] %s1879
      %1885 = dma.vmem_to_hbm [thread:$0]  %s1880, 256, %s7, [#allocation4], 128, 128, 8
    $region57: #{tpu_custom_call.1} parent=1 // pred_fallthru
      _
    // Predicated region
    $region58: #{tpu_custom_call.1} parent=1 // pred_check
      _
    $region59: #{tpu_custom_call.1} parent=1 // pred_check_branch
      %1887 = sbr.rel (0) target = $region61
    $region60: #{tpu_custom_call.1} parent=1 // pred_region
      %1888 = dma.done [#allocation4], 256
    $region61: #{tpu_custom_call.1} parent=1 // pred_fallthru
      _
    %1889 = vsyncpa [#allocation3], 1
    %1890 = vsyncpa [#allocation6], 1
    %1891 = vsyncpa [#allocation9], 1
    %1892 = vsyncpa [#allocation12], 1
    %1893 = vsyncpa [#allocation4], 1

</llo_original>
